<compile_context>
chip_gen: v5e
topology: v5e:2x2
jax: 0.10.0
libtpu: 0.0.40
codegen_flags: <defaults>
</compile_context>

<pallas_src>
import jax
import jax.numpy as jnp
import numpy as np
from jax.experimental import pallas as pl
from jax.experimental.pallas import tpu as pltpu


def _make_ssim_kernel(ssim_weight, c1, c2, C, H, W):
    a_c = float(ssim_weight) / C          # fold the channel mean 1/C
    b_c = (1.0 - float(ssim_weight)) / C
    c1s = 81.0 * float(c1)                # C1, C2 rescaled to 9x-window-sum
    c2s = 81.0 * float(c2)                # space; the 81^2 cancels in n/d.

    def kernel(p_ref, t_ref, out_ref):
        # p_ref / t_ref : (bt, C, H, W) unpadded pred / target
        # out_ref       : (bt, 1, H, W) loss map
        p = p_ref[...]
        t = t_ref[...]
        if p.dtype != jnp.float32:
            p = p.astype(jnp.float32)
        if t.dtype != jnp.float32:
            t = t.astype(jnp.float32)

        bt = p.shape[0]
        shape = (bt, C, H, W)
        # Edge masks (computed once, reused by all five pooled quantities).
        row = jax.lax.broadcasted_iota(jnp.int32, shape, 2)
        col = jax.lax.broadcasted_iota(jnp.int32, shape, 3)
        is_r0 = row == 0
        is_rl = row == (H - 1)
        is_c0 = col == 0
        is_cl = col == (W - 1)

        def pool9(x):
            # 3x3 reflected window SUM (not mean): separable 3-tap sums built
            # from XLU rotates; jnp.where swaps in the reflected neighbour at
            # the image edges (row -1 -> row 1, row H -> row H-2, same for W).
            xu = pltpu.roll(x, shift=H - 1, axis=2)   # x[i+1]  (== roll by -1)
            xd = pltpu.roll(x, shift=1, axis=2)       # x[i-1]
            rs = x + jnp.where(is_r0, xu, xd) + jnp.where(is_rl, xd, xu)
            rl = pltpu.roll(rs, shift=1, axis=3)      # rs[j-1]
            rr = pltpu.roll(rs, shift=W - 1, axis=3)  # rs[j+1] (== roll by -1)
            return rs + jnp.where(is_c0, rr, rl) + jnp.where(is_cl, rl, rr)

        s_p = pool9(p)
        s_t = pool9(t)
        s_pp = pool9(p * p)
        s_tt = pool9(t * t)
        s_pt = pool9(p * t)

        # mu = S/9, sigma = S2/9 - mu^2 = (9*S2 - S^2)/81.  The 1/81 factors
        # cancel between ssim_n and ssim_d, so C1/C2 carry the 81 instead.
        p_sq = s_p * s_p
        t_sq = s_t * s_t
        cross = s_p * s_t
        ssim_n = (2.0 * cross + c1s) * (2.0 * (9.0 * s_pt - cross) + c2s)
        ssim_d = (p_sq + t_sq + c1s) * (
            9.0 * s_pp - p_sq + 9.0 * s_tt - t_sq + c2s)

        # EUP approx reciprocal + 2 Newton steps instead of a VALU-heavy
        # f32 divide (ssim_d > 0 always: c1s, c2s > 0, squares >= 0).
        r = pl.reciprocal(ssim_d, approx=True)
        r = r * (2.0 - ssim_d * r)
        r = r * (2.0 - ssim_d * r)
        sim = jnp.clip((1.0 - ssim_n * r) * 0.5, 0.0, 1.0)   # (bt, C, H, W)

        l1 = jnp.abs(t - p)                                   # (bt, C, H, W)

        # a * mean_c(sim) + b * mean_c(l1) == sum_c(a/C * sim + b/C * l1)
        mix = a_c * sim + b_c * l1
        out_ref[...] = jnp.sum(mix, axis=1, keepdims=True).astype(out_ref.dtype)

    return kernel


def _vmem_budgets():
    """(tile_budget_bytes, vmem_limit_cap_bytes), per TPU generation."""
    try:
        cap = int(pltpu.get_tpu_info().vmem_capacity_bytes)
    except Exception:
        cap = 64 * 1024 * 1024                    # fallback: assume v7x-sized
    if cap <= 80 * 1024 * 1024:                   # v7x: 64 MiB physical / TC
        return 18 * 1024 * 1024, 42 * 1024 * 1024
    return 56 * 1024 * 1024, 100 * 1024 * 1024    # v5e / v6e: 128 MiB physical


def _pick_batch_tile(B, C, H, W, budget_bytes):
    """Largest batch tile (divisor of B) whose working set fits the budget."""
    # Per-image f32 working set: 2 inputs x 2 pipeline buffers, 5 window sums,
    # roll/select temporaries, products, edge masks, output-side maps (~26
    # (C,H,W) f32 slabs) plus the (1,H,W) output block double buffers.
    per_b = 4 * C * H * W * 26 + 4 * H * W * 4
    bt = max(1, min(B, budget_bytes // max(per_b, 1)))
    if B >= 2:
        bt = min(bt, B // 2)   # >= 2 grid steps => both v7x TCs busy; ~free
    while B % bt:              # elsewhere (one extra ~0.35us grid step).
        bt -= 1
    return bt, per_b


def ssim_loss(pred, target, *, ssim_weight=0.85):
    """pred, target: (B, C, H, W).  Returns (B, 1, H, W) float32 loss map."""
    B, C, H, W = pred.shape
    assert H >= 2 and W >= 2, "ReflectionPad2d(1) needs H, W >= 2"
    c1 = 0.01 ** 2
    c2 = 0.03 ** 2

    budget, limit_cap = _vmem_budgets()
    bt, per_b = _pick_batch_tile(B, C, H, W, budget)
    grid = (B // bt,)

    # Explicit VMEM limit: above the per-step need, below the physical cap.
    vmem_limit = int(min(max(bt * per_b + (8 << 20), 16 << 20), limit_cap))

    kernel = _make_ssim_kernel(ssim_weight, c1, c2, C, H, W)

    return pl.pallas_call(
        kernel,
        out_shape=jax.ShapeDtypeStruct((B, 1, H, W), jnp.float32),
        grid_spec=pltpu.PrefetchScalarGridSpec(
            num_scalar_prefetch=0,
            grid=grid,
            in_specs=[
                pl.BlockSpec((bt, C, H, W), lambda i: (i, 0, 0, 0)),
                pl.BlockSpec((bt, C, H, W), lambda i: (i, 0, 0, 0)),
            ],
            out_specs=pl.BlockSpec((bt, 1, H, W), lambda i: (i, 0, 0, 0)),
        ),
        compiler_params=pltpu.CompilerParams(
            dimension_semantics=("parallel",),
            vmem_limit_bytes=vmem_limit,
        ),
    )(pred, target)


def ssim_loss_ref(pred, target, *, ssim_weight=0.85):
    """Pure-JAX reference matching the PyTorch module."""
    a = ssim_weight
    b = 1.0 - ssim_weight
    c1 = 0.01 ** 2
    c2 = 0.03 ** 2
    l1 = jnp.mean(jnp.abs(target - pred), axis=1, keepdims=True)
    pp = jnp.pad(pred, ((0, 0), (0, 0), (1, 1), (1, 1)), mode="reflect")
    tp = jnp.pad(target, ((0, 0), (0, 0), (1, 1), (1, 1)), mode="reflect")
    H, W = pred.shape[2], pred.shape[3]

    def pool(x):
        s = 0.0
        for di in range(3):
            for dj in range(3):
                s = s + x[:, :, di:di + H, dj:dj + W]
        return s / 9.0

    mu_p, mu_t = pool(pp), pool(tp)
    sig_p = pool(pp * pp) - mu_p * mu_p
    sig_t = pool(tp * tp) - mu_t * mu_t
    sig_pt = pool(pp * tp) - mu_p * mu_t
    n = (2 * mu_p * mu_t + c1) * (2 * sig_pt + c2)
    d = (mu_p ** 2 + mu_t ** 2 + c1) * (sig_p + sig_t + c2)
    sim = jnp.clip((1 - n / d) / 2, 0.0, 1.0)
    sim = jnp.mean(sim, axis=1, keepdims=True)
    return a * sim + b * l1


if __name__ == "__main__":
    key = jax.random.PRNGKey(0)
    kp, kt = jax.random.split(key)
    B, C, H, W = 2, 4, 16, 16
    pred = jax.random.uniform(kp, (B, C, H, W), dtype=jnp.float32)
    target = jax.random.uniform(kt, (B, C, H, W), dtype=jnp.float32)

    out = jax.block_until_ready(ssim_loss(pred, target))
    ref = jax.block_until_ready(ssim_loss_ref(pred, target))

    np.testing.assert_allclose(np.asarray(out), np.asarray(ref),
                               rtol=1e-5, atol=1e-5)
    print("KERNEL_OK")
</pallas_src>

<mosaic_0001>
module attributes {stable_mosaic.version = 11 : i64} {
  func.func @kernel(%arg0: i32, %arg1: memref<1x4x16x16xf32, #tpu.memory_space<vmem>>, %arg2: memref<1x4x16x16xf32, #tpu.memory_space<vmem>>, %arg3: memref<1x1x16x16xf32, #tpu.memory_space<vmem>>) attributes {dimension_semantics = [#tpu.dimension_semantics<parallel>], iteration_bounds = array<i64: 2>, scalar_prefetch = 0 : i64, scratch_operands = 0 : i64, tpu.core_type = #tpu.core_type<tc>, window_params = [{transform_indices = @transform_0, window_bounds = array<i64: 1, 4, 16, 16>}, {transform_indices = @transform_1, window_bounds = array<i64: 1, 4, 16, 16>}, {transform_indices = @transform_2, window_bounds = array<i64: 1, 1, 16, 16>}]} {
    %c0 = arith.constant 0 : index
    %c0_0 = arith.constant 0 : index
    %c0_1 = arith.constant 0 : index
    %c0_2 = arith.constant 0 : index
    %0 = vector.load %arg1[%c0, %c0_0, %c0_1, %c0_2] : memref<1x4x16x16xf32, #tpu.memory_space<vmem>>, vector<1x4x16x16xf32>
    %c0_3 = arith.constant 0 : index
    %c0_4 = arith.constant 0 : index
    %c0_5 = arith.constant 0 : index
    %c0_6 = arith.constant 0 : index
    %1 = vector.load %arg2[%c0_3, %c0_4, %c0_5, %c0_6] : memref<1x4x16x16xf32, #tpu.memory_space<vmem>>, vector<1x4x16x16xf32>
    %2 = tpu.iota {dimensions = array<i32: 2>} : vector<1x4x16x16xi32>
    %3 = tpu.iota {dimensions = array<i32: 3>} : vector<1x4x16x16xi32>
    %c0_i32 = arith.constant 0 : i32
    %4 = vector.broadcast %c0_i32 : i32 to vector<1x4x16x16xi32>
    %5 = arith.cmpi eq, %2, %4 : vector<1x4x16x16xi32>
    %c15_i32 = arith.constant 15 : i32
    %6 = vector.broadcast %c15_i32 : i32 to vector<1x4x16x16xi32>
    %7 = arith.cmpi eq, %2, %6 : vector<1x4x16x16xi32>
    %c0_i32_7 = arith.constant 0 : i32
    %8 = vector.broadcast %c0_i32_7 : i32 to vector<1x4x16x16xi32>
    %9 = arith.cmpi eq, %3, %8 : vector<1x4x16x16xi32>
    %c15_i32_8 = arith.constant 15 : i32
    %10 = vector.broadcast %c15_i32_8 : i32 to vector<1x4x16x16xi32>
    %11 = arith.cmpi eq, %3, %10 : vector<1x4x16x16xi32>
    %c15_i32_9 = arith.constant 15 : i32
    %12 = tpu.dynamic_rotate %0 by %c15_i32_9 dim 2 : vector<1x4x16x16xf32>, i32 -> vector<1x4x16x16xf32>
    %c1_i32 = arith.constant 1 : i32
    %13 = tpu.dynamic_rotate %0 by %c1_i32 dim 2 : vector<1x4x16x16xf32>, i32 -> vector<1x4x16x16xf32>
    %14 = arith.select %5, %12, %13 : vector<1x4x16x16xi1>, vector<1x4x16x16xf32>
    %15 = arith.addf %0, %14 : vector<1x4x16x16xf32>
    %16 = arith.select %7, %13, %12 : vector<1x4x16x16xi1>, vector<1x4x16x16xf32>
    %17 = arith.addf %15, %16 : vector<1x4x16x16xf32>
    %c1_i32_10 = arith.constant 1 : i32
    %18 = tpu.dynamic_rotate %17 by %c1_i32_10 dim 3 : vector<1x4x16x16xf32>, i32 -> vector<1x4x16x16xf32>
    %c15_i32_11 = arith.constant 15 : i32
    %19 = tpu.dynamic_rotate %17 by %c15_i32_11 dim 3 : vector<1x4x16x16xf32>, i32 -> vector<1x4x16x16xf32>
    %20 = arith.select %9, %19, %18 : vector<1x4x16x16xi1>, vector<1x4x16x16xf32>
    %21 = arith.addf %17, %20 : vector<1x4x16x16xf32>
    %22 = arith.select %11, %18, %19 : vector<1x4x16x16xi1>, vector<1x4x16x16xf32>
    %23 = arith.addf %21, %22 : vector<1x4x16x16xf32>
    %c15_i32_12 = arith.constant 15 : i32
    %24 = tpu.dynamic_rotate %1 by %c15_i32_12 dim 2 : vector<1x4x16x16xf32>, i32 -> vector<1x4x16x16xf32>
    %c1_i32_13 = arith.constant 1 : i32
    %25 = tpu.dynamic_rotate %1 by %c1_i32_13 dim 2 : vector<1x4x16x16xf32>, i32 -> vector<1x4x16x16xf32>
    %26 = arith.select %5, %24, %25 : vector<1x4x16x16xi1>, vector<1x4x16x16xf32>
    %27 = arith.addf %1, %26 : vector<1x4x16x16xf32>
    %28 = arith.select %7, %25, %24 : vector<1x4x16x16xi1>, vector<1x4x16x16xf32>
    %29 = arith.addf %27, %28 : vector<1x4x16x16xf32>
    %c1_i32_14 = arith.constant 1 : i32
    %30 = tpu.dynamic_rotate %29 by %c1_i32_14 dim 3 : vector<1x4x16x16xf32>, i32 -> vector<1x4x16x16xf32>
    %c15_i32_15 = arith.constant 15 : i32
    %31 = tpu.dynamic_rotate %29 by %c15_i32_15 dim 3 : vector<1x4x16x16xf32>, i32 -> vector<1x4x16x16xf32>
    %32 = arith.select %9, %31, %30 : vector<1x4x16x16xi1>, vector<1x4x16x16xf32>
    %33 = arith.addf %29, %32 : vector<1x4x16x16xf32>
    %34 = arith.select %11, %30, %31 : vector<1x4x16x16xi1>, vector<1x4x16x16xf32>
    %35 = arith.addf %33, %34 : vector<1x4x16x16xf32>
    %36 = arith.mulf %0, %0 : vector<1x4x16x16xf32>
    %c15_i32_16 = arith.constant 15 : i32
    %37 = tpu.dynamic_rotate %36 by %c15_i32_16 dim 2 : vector<1x4x16x16xf32>, i32 -> vector<1x4x16x16xf32>
    %c1_i32_17 = arith.constant 1 : i32
    %38 = tpu.dynamic_rotate %36 by %c1_i32_17 dim 2 : vector<1x4x16x16xf32>, i32 -> vector<1x4x16x16xf32>
    %39 = arith.select %5, %37, %38 : vector<1x4x16x16xi1>, vector<1x4x16x16xf32>
    %40 = arith.addf %36, %39 : vector<1x4x16x16xf32>
    %41 = arith.select %7, %38, %37 : vector<1x4x16x16xi1>, vector<1x4x16x16xf32>
    %42 = arith.addf %40, %41 : vector<1x4x16x16xf32>
    %c1_i32_18 = arith.constant 1 : i32
    %43 = tpu.dynamic_rotate %42 by %c1_i32_18 dim 3 : vector<1x4x16x16xf32>, i32 -> vector<1x4x16x16xf32>
    %c15_i32_19 = arith.constant 15 : i32
    %44 = tpu.dynamic_rotate %42 by %c15_i32_19 dim 3 : vector<1x4x16x16xf32>, i32 -> vector<1x4x16x16xf32>
    %45 = arith.select %9, %44, %43 : vector<1x4x16x16xi1>, vector<1x4x16x16xf32>
    %46 = arith.addf %42, %45 : vector<1x4x16x16xf32>
    %47 = arith.select %11, %43, %44 : vector<1x4x16x16xi1>, vector<1x4x16x16xf32>
    %48 = arith.addf %46, %47 : vector<1x4x16x16xf32>
    %49 = arith.mulf %1, %1 : vector<1x4x16x16xf32>
    %c15_i32_20 = arith.constant 15 : i32
    %50 = tpu.dynamic_rotate %49 by %c15_i32_20 dim 2 : vector<1x4x16x16xf32>, i32 -> vector<1x4x16x16xf32>
    %c1_i32_21 = arith.constant 1 : i32
    %51 = tpu.dynamic_rotate %49 by %c1_i32_21 dim 2 : vector<1x4x16x16xf32>, i32 -> vector<1x4x16x16xf32>
    %52 = arith.select %5, %50, %51 : vector<1x4x16x16xi1>, vector<1x4x16x16xf32>
    %53 = arith.addf %49, %52 : vector<1x4x16x16xf32>
    %54 = arith.select %7, %51, %50 : vector<1x4x16x16xi1>, vector<1x4x16x16xf32>
    %55 = arith.addf %53, %54 : vector<1x4x16x16xf32>
    %c1_i32_22 = arith.constant 1 : i32
    %56 = tpu.dynamic_rotate %55 by %c1_i32_22 dim 3 : vector<1x4x16x16xf32>, i32 -> vector<1x4x16x16xf32>
    %c15_i32_23 = arith.constant 15 : i32
    %57 = tpu.dynamic_rotate %55 by %c15_i32_23 dim 3 : vector<1x4x16x16xf32>, i32 -> vector<1x4x16x16xf32>
    %58 = arith.select %9, %57, %56 : vector<1x4x16x16xi1>, vector<1x4x16x16xf32>
    %59 = arith.addf %55, %58 : vector<1x4x16x16xf32>
    %60 = arith.select %11, %56, %57 : vector<1x4x16x16xi1>, vector<1x4x16x16xf32>
    %61 = arith.addf %59, %60 : vector<1x4x16x16xf32>
    %62 = arith.mulf %0, %1 : vector<1x4x16x16xf32>
    %c15_i32_24 = arith.constant 15 : i32
    %63 = tpu.dynamic_rotate %62 by %c15_i32_24 dim 2 : vector<1x4x16x16xf32>, i32 -> vector<1x4x16x16xf32>
    %c1_i32_25 = arith.constant 1 : i32
    %64 = tpu.dynamic_rotate %62 by %c1_i32_25 dim 2 : vector<1x4x16x16xf32>, i32 -> vector<1x4x16x16xf32>
    %65 = arith.select %5, %63, %64 : vector<1x4x16x16xi1>, vector<1x4x16x16xf32>
    %66 = arith.addf %62, %65 : vector<1x4x16x16xf32>
    %67 = arith.select %7, %64, %63 : vector<1x4x16x16xi1>, vector<1x4x16x16xf32>
    %68 = arith.addf %66, %67 : vector<1x4x16x16xf32>
    %c1_i32_26 = arith.constant 1 : i32
    %69 = tpu.dynamic_rotate %68 by %c1_i32_26 dim 3 : vector<1x4x16x16xf32>, i32 -> vector<1x4x16x16xf32>
    %c15_i32_27 = arith.constant 15 : i32
    %70 = tpu.dynamic_rotate %68 by %c15_i32_27 dim 3 : vector<1x4x16x16xf32>, i32 -> vector<1x4x16x16xf32>
    %71 = arith.select %9, %70, %69 : vector<1x4x16x16xi1>, vector<1x4x16x16xf32>
    %72 = arith.addf %68, %71 : vector<1x4x16x16xf32>
    %73 = arith.select %11, %69, %70 : vector<1x4x16x16xi1>, vector<1x4x16x16xf32>
    %74 = arith.addf %72, %73 : vector<1x4x16x16xf32>
    %75 = arith.mulf %23, %23 : vector<1x4x16x16xf32>
    %76 = arith.mulf %35, %35 : vector<1x4x16x16xf32>
    %77 = arith.mulf %23, %35 : vector<1x4x16x16xf32>
    %cst = arith.constant 2.000000e+00 : f32
    %78 = vector.broadcast %cst : f32 to vector<1x4x16x16xf32>
    %79 = arith.mulf %78, %77 : vector<1x4x16x16xf32>
    %cst_28 = arith.constant 8.100000e-03 : f32
    %80 = vector.broadcast %cst_28 : f32 to vector<1x4x16x16xf32>
    %81 = arith.addf %79, %80 : vector<1x4x16x16xf32>
    %cst_29 = arith.constant 9.000000e+00 : f32
    %82 = vector.broadcast %cst_29 : f32 to vector<1x4x16x16xf32>
    %83 = arith.mulf %82, %74 : vector<1x4x16x16xf32>
    %84 = arith.subf %83, %77 : vector<1x4x16x16xf32>
    %cst_30 = arith.constant 2.000000e+00 : f32
    %85 = vector.broadcast %cst_30 : f32 to vector<1x4x16x16xf32>
    %86 = arith.mulf %85, %84 : vector<1x4x16x16xf32>
    %cst_31 = arith.constant 7.290000e-02 : f32
    %87 = vector.broadcast %cst_31 : f32 to vector<1x4x16x16xf32>
    %88 = arith.addf %86, %87 : vector<1x4x16x16xf32>
    %89 = arith.mulf %81, %88 : vector<1x4x16x16xf32>
    %90 = arith.addf %75, %76 : vector<1x4x16x16xf32>
    %cst_32 = arith.constant 8.100000e-03 : f32
    %91 = vector.broadcast %cst_32 : f32 to vector<1x4x16x16xf32>
    %92 = arith.addf %90, %91 : vector<1x4x16x16xf32>
    %cst_33 = arith.constant 9.000000e+00 : f32
    %93 = vector.broadcast %cst_33 : f32 to vector<1x4x16x16xf32>
    %94 = arith.mulf %93, %48 : vector<1x4x16x16xf32>
    %95 = arith.subf %94, %75 : vector<1x4x16x16xf32>
    %cst_34 = arith.constant 9.000000e+00 : f32
    %96 = vector.broadcast %cst_34 : f32 to vector<1x4x16x16xf32>
    %97 = arith.mulf %96, %61 : vector<1x4x16x16xf32>
    %98 = arith.addf %95, %97 : vector<1x4x16x16xf32>
    %99 = arith.subf %98, %76 : vector<1x4x16x16xf32>
    %cst_35 = arith.constant 7.290000e-02 : f32
    %100 = vector.broadcast %cst_35 : f32 to vector<1x4x16x16xf32>
    %101 = arith.addf %99, %100 : vector<1x4x16x16xf32>
    %102 = arith.mulf %92, %101 : vector<1x4x16x16xf32>
    %103 = tpu.reciprocal %102 {approx = true} : vector<1x4x16x16xf32> -> vector<1x4x16x16xf32>
    %104 = arith.mulf %102, %103 : vector<1x4x16x16xf32>
    %cst_36 = arith.constant 2.000000e+00 : f32
    %105 = vector.broadcast %cst_36 : f32 to vector<1x4x16x16xf32>
    %106 = arith.subf %105, %104 : vector<1x4x16x16xf32>
    %107 = arith.mulf %103, %106 : vector<1x4x16x16xf32>
    %108 = arith.mulf %102, %107 : vector<1x4x16x16xf32>
    %cst_37 = arith.constant 2.000000e+00 : f32
    %109 = vector.broadcast %cst_37 : f32 to vector<1x4x16x16xf32>
    %110 = arith.subf %109, %108 : vector<1x4x16x16xf32>
    %111 = arith.mulf %107, %110 : vector<1x4x16x16xf32>
    %112 = arith.mulf %89, %111 : vector<1x4x16x16xf32>
    %cst_38 = arith.constant 1.000000e+00 : f32
    %113 = vector.broadcast %cst_38 : f32 to vector<1x4x16x16xf32>
    %114 = arith.subf %113, %112 : vector<1x4x16x16xf32>
    %cst_39 = arith.constant 5.000000e-01 : f32
    %115 = vector.broadcast %cst_39 : f32 to vector<1x4x16x16xf32>
    %116 = arith.mulf %114, %115 : vector<1x4x16x16xf32>
    %cst_40 = arith.constant 0.000000e+00 : f32
    %cst_41 = arith.constant 1.000000e+00 : f32
    %117 = vector.broadcast %cst_40 : f32 to vector<1x4x16x16xf32>
    %118 = arith.maximumf %117, %116 : vector<1x4x16x16xf32>
    %119 = vector.broadcast %cst_41 : f32 to vector<1x4x16x16xf32>
    %120 = arith.minimumf %119, %118 : vector<1x4x16x16xf32>
    %121 = arith.subf %1, %0 : vector<1x4x16x16xf32>
    %122 = math.absf %121 : vector<1x4x16x16xf32>
    %cst_42 = arith.constant 2.125000e-01 : f32
    %123 = vector.broadcast %cst_42 : f32 to vector<1x4x16x16xf32>
    %124 = arith.mulf %123, %120 : vector<1x4x16x16xf32>
    %cst_43 = arith.constant 3.750000e-02 : f32
    %125 = vector.broadcast %cst_43 : f32 to vector<1x4x16x16xf32>
    %126 = arith.mulf %125, %122 : vector<1x4x16x16xf32>
    %127 = arith.addf %124, %126 : vector<1x4x16x16xf32>
    %cst_44 = arith.constant dense<0.000000e+00> : vector<1x16x16xf32>
    %128 = vector.multi_reduction <add>, %127, %cst_44 [1] : vector<1x4x16x16xf32> to vector<1x16x16xf32>
    %129 = vector.shape_cast %128 : vector<1x16x16xf32> to vector<1x1x16x16xf32>
    %c0_45 = arith.constant 0 : index
    %c0_46 = arith.constant 0 : index
    %c0_47 = arith.constant 0 : index
    %c0_48 = arith.constant 0 : index
    %130 = vector.load %arg3[%c0_45, %c0_46, %c0_47, %c0_48] : memref<1x1x16x16xf32, #tpu.memory_space<vmem>>, vector<1x1x16x16xf32>
    tpu.vector_store %arg3[%c0_45, %c0_46, %c0_47, %c0_48], %129 {strides = array<i32>} : memref<1x1x16x16xf32, #tpu.memory_space<vmem>>, vector<1x1x16x16xf32>,
    return
  }
  func.func @transform_0(%arg0: i32) -> (i32, i32, i32, i32) {
    %c0_i32 = arith.constant 0 : i32
    %c0_i32_0 = arith.constant 0 : i32
    %c0_i32_1 = arith.constant 0 : i32
    %c0_i32_2 = arith.constant 0 : i32
    return %arg0, %c0_i32, %c0_i32_0, %c0_i32_1 : i32, i32, i32, i32
  }
  func.func @transform_1(%arg0: i32) -> (i32, i32, i32, i32) {
    %c0_i32 = arith.constant 0 : i32
    %c0_i32_0 = arith.constant 0 : i32
    %c0_i32_1 = arith.constant 0 : i32
    %c0_i32_2 = arith.constant 0 : i32
    return %arg0, %c0_i32, %c0_i32_0, %c0_i32_1 : i32, i32, i32, i32
  }
  func.func @transform_2(%arg0: i32) -> (i32, i32, i32, i32) {
    %c0_i32 = arith.constant 0 : i32
    %c0_i32_0 = arith.constant 0 : i32
    %c0_i32_1 = arith.constant 0 : i32
    %c0_i32_2 = arith.constant 0 : i32
    return %arg0, %c0_i32, %c0_i32_0, %c0_i32_1 : i32, i32, i32, i32
  }
}

</mosaic_0001>

<llo_original>
// kernel: tpu_custom_call.1
$region0: #{tpu_custom_call.1}
  #allocation0 [shape = 'u32[]', space=smem, size = 0x4, offset = 0x4, fixed_abs, tag = 'smem constant byte address 0x4 - core index']
  #allocation1 [shape = 'u32[72,128]{1,0:T(1,128)}', space=vmem, size = 0x9000, scoped, tag = 'internal scratch']
  %s0 = inlined_call_operand.hbm [shape: f32[2,4,16,16], index: 0, kind: input, shape index: {}]
  %s1 = inlined_call_operand.hbm [shape: f32[2,4,16,16], index: 1, kind: input, shape index: {}]
  %s2 = inlined_call_operand.hbm [shape: f32[2,1,16,16], index: 2, kind: output, shape index: {}]
  %s3 = sld [smem:[#allocation0]]
  $region49: #{tpu_custom_call.1} parent=0
    _
  %s5 = ssub.s32 1, %s3
  %s6 = scalar_select 0, %s5, %s3
  $region1: #{tpu_custom_call.1} parent=0
    #allocation2 [shape = 'u8[65536]{0}', space=vmem, size = 0x10000, scoped, tag = 'input window, operand 0']
    #allocation3 [shape = 's32[2]{0}', space=sflag, size = 0x8, scoped, tag = 'scoped memory for tpu_custom_call.1']
    #allocation4 [shape = 's32[2]{0}', space=sflag, size = 0x8, scoped, tag = 'scoped memory for tpu_custom_call.1']
    #allocation5 [shape = 'u8[65536]{0}', space=vmem, size = 0x10000, scoped, tag = 'input window, operand 1']
    #allocation6 [shape = 's32[2]{0}', space=sflag, size = 0x8, scoped, tag = 'scoped memory for tpu_custom_call.1']
    #allocation7 [shape = 'u8[16384]{0}', space=vmem, size = 0x4000, scoped, tag = 'output window, operand 0']
    %7 = vsyncpa [#allocation3], 0
    %s8 = scalar_lea.sflag [#allocation3], 1
    %9 = vsyncpa %s8, 0
    %10 = vsyncpa [#allocation6], 0
    %s11 = scalar_lea.sflag [#allocation6], 1
    %12 = vsyncpa %s11, 0
    %13 = vsyncpa [#allocation4], 0
    %s14 = scalar_lea.sflag [#allocation4], 1
    %15 = vsyncpa %s14, 0
    loop: start=0, step=1, limit=4
    $region2: #{tpu_custom_call.1} parent=1 // loop_pre_header
      _
    $region3: #{tpu_custom_call.1} parent=1 // loop_header
      %s17 = sphi 0, %s21
      %p18 = scmp.ge.s32.totalorder %s17, 4
      %s27 = sphi 0, %s29
      %s30 = sphi 0, %s27
      %s31 = sphi 0, %s30
      %s47 = sphi 0, %s31
      %s53 = sphi 0, %s55
      %s56 = sphi 0, %s53
      %s57 = sphi 0, %s56
      %s73 = sphi 0, %s57
      %s79 = sphi 0, %s81
      %s82 = sphi 0, %s79
      %s83 = sphi 0, %s82
      %s99 = sphi 0, %s83
    $region4: #{tpu_custom_call.1} parent=1 // loop_header_branch
      %20 = sbr.rel (%p18) target = $region8
    $region5: #{tpu_custom_call.1} parent=1 // loop_body
      %s22 = ssub.s32 %s17, 1
      %s23 = ssub.s32 %s17, 2
      %s24 = sadd.s32 %s17, 1
      %s25 = ssub.s32 %s17, %s24
      %p26 = scmp.eq.s32.totalorder %s25, 0
      %s28 = sadd.s32 %s27, 1
      %s29 = scalar_select %p26, %s27, %s28
      %p32 = pneg %p26
      %p33 = scmp.eq.s32.totalorder %s17, 1
      %p34 = por %p32, %p33
      %p35 = scmp.ne.s32.totalorder %s27, %s30
      %p36 = scmp.eq.s32.totalorder %s17, 0
      %p37 = por %p35, %p36
      %p38 = scmp.ne.s32.totalorder %s27, %s30
      %p39 = scmp.eq.s32.totalorder %s22, 1
      %p40 = por %p38, %p39
      %p41 = scmp.ne.s32.totalorder %s30, %s31
      %p42 = scmp.eq.s32.totalorder %s22, 0
      %p43 = por %p41, %p42
      %p44 = scmp.ne.s32.totalorder %s30, %s31
      %p45 = scmp.eq.s32.totalorder %s23, 1
      %p46 = por %p44, %p45
      %p48 = scmp.ne.s32.totalorder %s31, %s47
      %p49 = scmp.eq.s32.totalorder %s23, 0
      %p50 = por %p48, %p49
      %s51 = ssub.s32 %s17, %s24
      %p52 = scmp.eq.s32.totalorder %s51, 0
      %s54 = sadd.s32 %s53, 1
      %s55 = scalar_select %p52, %s53, %s54
      %p58 = pneg %p52
      %p59 = scmp.eq.s32.totalorder %s17, 1
      %p60 = por %p58, %p59
      %p61 = scmp.ne.s32.totalorder %s53, %s56
      %p62 = scmp.eq.s32.totalorder %s17, 0
      %p63 = por %p61, %p62
      %p64 = scmp.ne.s32.totalorder %s53, %s56
      %p65 = scmp.eq.s32.totalorder %s22, 1
      %p66 = por %p64, %p65
      %p67 = scmp.ne.s32.totalorder %s56, %s57
      %p68 = scmp.eq.s32.totalorder %s22, 0
      %p69 = por %p67, %p68
      %p70 = scmp.ne.s32.totalorder %s56, %s57
      %p71 = scmp.eq.s32.totalorder %s23, 1
      %p72 = por %p70, %p71
      %p74 = scmp.ne.s32.totalorder %s57, %s73
      %p75 = scmp.eq.s32.totalorder %s23, 0
      %p76 = por %p74, %p75
      %s77 = ssub.s32 %s17, %s24
      %p78 = scmp.eq.s32.totalorder %s77, 0
      %s80 = sadd.s32 %s79, 1
      %s81 = scalar_select %p78, %s79, %s80
      %p84 = pneg %p78
      %p85 = scmp.eq.s32.totalorder %s17, 1
      %p86 = por %p84, %p85
      %p87 = scmp.ne.s32.totalorder %s79, %s82
      %p88 = scmp.eq.s32.totalorder %s17, 0
      %p89 = por %p87, %p88
      %p90 = scmp.ne.s32.totalorder %s79, %s82
      %p91 = scmp.eq.s32.totalorder %s22, 1
      %p92 = por %p90, %p91
      %p93 = scmp.ne.s32.totalorder %s82, %s83
      %p94 = scmp.eq.s32.totalorder %s22, 0
      %p95 = por %p93, %p94
      %p96 = scmp.ne.s32.totalorder %s82, %s83
      %p97 = scmp.eq.s32.totalorder %s23, 1
      %p98 = por %p96, %p97
      %p100 = scmp.ne.s32.totalorder %s83, %s99
      %p101 = scmp.eq.s32.totalorder %s23, 0
      %p102 = por %p100, %p101
      %p103 = scmp.le.s32.totalorder 1, %s17
      %p104 = scmp.lt.s32.totalorder %s17, 3
      %p105 = pnand %p103, %p104
      %p106 = pneg %p105
      // Predicated region
      $region9: #{tpu_custom_call.1} parent=5 // pred_check
        _
      $region10: #{tpu_custom_call.1} parent=5 // pred_check_branch
        %108 = sbr.rel (%p105) target = $region12
      $region11: #{tpu_custom_call.1} parent=5 // pred_region
        %s109 = ssub.s32 %s17, 1
      $region12: #{tpu_custom_call.1} parent=5 // pred_fallthru
        _
      %p110 = scmp.lt.s32.totalorder %s17, 2
      // Predicated region
      $region13: #{tpu_custom_call.1} parent=5 // pred_check
        %p111 = pneg %p110
      $region14: #{tpu_custom_call.1} parent=5 // pred_check_branch
        %113 = sbr.rel (%p111) target = $region16
      $region15: #{tpu_custom_call.1} parent=5 // pred_region
        // Predicated region
        $region17: #{tpu_custom_call.1} parent=15 // pred_check
          %p114 = pneg %p37
        $region18: #{tpu_custom_call.1} parent=15 // pred_check_branch
          %116 = sbr.rel (%p114) target = $region20
        $region19: #{tpu_custom_call.1} parent=15 // pred_region
          %s117 = sand.u32 %s27, 1
          %s118 = scalar_lea.sflag [#allocation3], %s117
          %s119 = sand.u32 %s27, 1
          %s120 = smul.addr %s119, 64
          %s121 = scalar_lea.vmem [#allocation2], %s120
          %123 = vsyncadd %s118, 0
          %s124 = smul.addr %s17, 8
          %s125 = smul.addr %s124, 8
          %s126 = scalar_lea.hbm %s0, %s125
          %s127 = sshll.u32 %s126, 4
          %s128 = int_to_ptr.hbm [resolvable:$true] %s127
          %s129 = sshll.u32 %s121, 4
          %s130 = int_to_ptr.vmem [resolvable:$true] %s129
          %135 = dma.hbm_to_vmem [thread:$0]  %s128, 1024, %s130, %s118, 128, 128, 8
        $region20: #{tpu_custom_call.1} parent=15 // pred_fallthru
          _
        // Predicated region
        $region21: #{tpu_custom_call.1} parent=15 // pred_check
          %p136 = pneg %p63
        $region22: #{tpu_custom_call.1} parent=15 // pred_check_branch
          %138 = sbr.rel (%p136) target = $region24
        $region23: #{tpu_custom_call.1} parent=15 // pred_region
          %s139 = sand.u32 %s53, 1
          %s140 = scalar_lea.sflag [#allocation6], %s139
          %s141 = sand.u32 %s53, 1
          %s142 = smul.addr %s141, 64
          %s143 = scalar_lea.vmem [#allocation5], %s142
          %145 = vsyncadd %s140, 0
          %s146 = smul.addr %s17, 8
          %s147 = smul.addr %s146, 8
          %s148 = scalar_lea.hbm %s1, %s147
          %s149 = sshll.u32 %s148, 4
          %s150 = int_to_ptr.hbm [resolvable:$true] %s149
          %s151 = sshll.u32 %s143, 4
          %s152 = int_to_ptr.vmem [resolvable:$true] %s151
          %157 = dma.hbm_to_vmem [thread:$0]  %s150, 1024, %s152, %s140, 128, 128, 8
        $region24: #{tpu_custom_call.1} parent=15 // pred_fallthru
          _
      $region16: #{tpu_custom_call.1} parent=5 // pred_fallthru
        _
      %p158 = scmp.le.s32.totalorder 1, %s17
      %p159 = scmp.lt.s32.totalorder %s17, 3
      %p160 = pnand %p158, %p159
      %p161 = pneg %p160
      // Predicated region
      $region25: #{tpu_custom_call.1} parent=5 // pred_check
        _
      $region26: #{tpu_custom_call.1} parent=5 // pred_check_branch
        %163 = sbr.rel (%p160) target = $region28
      $region27: #{tpu_custom_call.1} parent=5 // pred_region
        %s164 = ssub.s32 %s17, 1
        %s165 = sand.u32 %s30, 1
        %s166 = scalar_lea.sflag [#allocation3], %s165
        %s167 = sand.u32 %s30, 1
        %s168 = smul.addr %s167, 64
        %s169 = scalar_lea.vmem [#allocation2], %s168
        // Predicated region
        $region29: #{tpu_custom_call.1} parent=27 // pred_check
          %p170 = pneg %p43
        $region30: #{tpu_custom_call.1} parent=27 // pred_check_branch
          %172 = sbr.rel (%p170) target = $region32
        $region31: #{tpu_custom_call.1} parent=27 // pred_region
          %174 = dma.done %s166, 1024
        $region32: #{tpu_custom_call.1} parent=27 // pred_fallthru
          _
        %s175 = sand.u32 %s56, 1
        %s176 = scalar_lea.sflag [#allocation6], %s175
        %s177 = sand.u32 %s56, 1
        %s178 = smul.addr %s177, 64
        %s179 = scalar_lea.vmem [#allocation5], %s178
        // Predicated region
        $region33: #{tpu_custom_call.1} parent=27 // pred_check
          %p180 = pneg %p69
        $region34: #{tpu_custom_call.1} parent=27 // pred_check_branch
          %182 = sbr.rel (%p180) target = $region36
        $region35: #{tpu_custom_call.1} parent=27 // pred_region
          %184 = dma.done %s176, 1024
        $region36: #{tpu_custom_call.1} parent=27 // pred_fallthru
          _
        %s185 = sand.u32 %s30, 1
        %s186 = scalar_lea.sflag [#allocation3], %s185
        %s187 = sand.u32 %s30, 1
        %s188 = smul.addr %s187, 64
        %s189 = scalar_lea.vmem [#allocation2], %s188
        %p190 = pneg %p43
        %p191 = pneg %p40
        %s192 = sand.u32 %s56, 1
        %s193 = scalar_lea.sflag [#allocation6], %s192
        %s194 = sand.u32 %s56, 1
        %s195 = smul.addr %s194, 64
        %s196 = scalar_lea.vmem [#allocation5], %s195
        %p197 = pneg %p69
        %p198 = pneg %p66
        %p199 = pneg %p95
        %p200 = pneg %p92
        %s201 = sand.u32 %s82, 1
        %s202 = scalar_lea.sflag [#allocation4], %s201
        %s203 = sand.u32 %s82, 1
        %s204 = smul.addr %s203, 16
        %s205 = scalar_lea.vmem [#allocation7], %s204
        %v206 = vld [vmem:[%s169] sm:$0xff]
        %v207 = vld [vmem:[%s169 + $0x8] sm:$0xff]
        %v208 = vld [vmem:[%s169 + $0x10] sm:$0xff]
        %v209 = vld [vmem:[%s169 + $0x18] sm:$0xff]
        %v210 = vld [vmem:[%s169 + $0x20] sm:$0xff]
        %v211 = vld [vmem:[%s169 + $0x28] sm:$0xff]
        %v212 = vld [vmem:[%s169 + $0x30] sm:$0xff]
        %v213 = vld [vmem:[%s169 + $0x38] sm:$0xff]
        %v214 = vld [vmem:[%s179] sm:$0xff]
        %v215 = vld [vmem:[%s179 + $0x8] sm:$0xff]
        %v216 = vld [vmem:[%s179 + $0x10] sm:$0xff]
        %v217 = vld [vmem:[%s179 + $0x18] sm:$0xff]
        %v218 = vld [vmem:[%s179 + $0x20] sm:$0xff]
        %v219 = vld [vmem:[%s179 + $0x28] sm:$0xff]
        %v220 = vld [vmem:[%s179 + $0x30] sm:$0xff]
        %v221 = vld [vmem:[%s179 + $0x38] sm:$0xff]
        %v222 = vlaneseq
        %v223 = vshrl.u32 %v222, 7
        %v224 = vadd.s32 %v223, 8
        %v225 = vlaneseq
        %v226 = vand.u32 %v225, 127
        %vm227 = vcmp.eq.s32.totalorder %v223, 0
        %vm228 = vcmp.eq.s32.totalorder %v224, 0
        %vm229 = vcmp.eq.s32.totalorder %v223, 15
        %vm230 = vcmp.eq.s32.totalorder %v224, 15
        %vm231 = vcmp.eq.s32.totalorder %v226, 0
        %vm232 = vcmp.eq.s32.totalorder %v226, 15
        %v233 = vrot.slane %v206, 1
        %v234 = vrot.slane %v208, 1
        %v235 = vrot.slane %v210, 1
        %v236 = vrot.slane %v212, 1
        %v237 = vrot.slane %v207, 1
        %v238 = vrot.slane %v209, 1
        %v239 = vrot.slane %v211, 1
        %v240 = vrot.slane %v213, 1
        %vm241 = vcmp.lt.s32.totalorder %v223, 7
        %v242 = vsel %vm241, %v233, %v237
        %v243 = vsel %vm241, %v234, %v238
        %v244 = vsel %vm241, %v235, %v239
        %v245 = vsel %vm241, %v236, %v240
        %v246 = vsel %vm241, %v237, %v233
        %v247 = vsel %vm241, %v238, %v234
        %v248 = vsel %vm241, %v239, %v235
        %v249 = vsel %vm241, %v240, %v236
        %v250 = vrot.slane %v206, 7
        %v251 = vrot.slane %v208, 7
        %v252 = vrot.slane %v210, 7
        %v253 = vrot.slane %v212, 7
        %v254 = vrot.slane %v207, 7
        %v255 = vrot.slane %v209, 7
        %v256 = vrot.slane %v211, 7
        %v257 = vrot.slane %v213, 7
        %vm258 = vcmp.lt.s32.totalorder %v223, 1
        %v259 = vsel %vm258, %v250, %v254
        %v260 = vsel %vm258, %v251, %v255
        %v261 = vsel %vm258, %v252, %v256
        %v262 = vsel %vm258, %v253, %v257
        %v263 = vsel %vm258, %v254, %v250
        %v264 = vsel %vm258, %v255, %v251
        %v265 = vsel %vm258, %v256, %v252
        %v266 = vsel %vm258, %v257, %v253
        %v267 = vsel %vm227, %v242, %v263
        %v268 = vsel %vm228, %v246, %v259
        %v269 = vsel %vm227, %v243, %v264
        %v270 = vsel %vm228, %v247, %v260
        %v271 = vsel %vm227, %v244, %v265
        %v272 = vsel %vm228, %v248, %v261
        %v273 = vsel %vm227, %v245, %v266
        %v274 = vsel %vm228, %v249, %v262
        %v275 = vadd.f32 %v206, %v267
        %v276 = vadd.f32 %v207, %v268
        %v277 = vadd.f32 %v208, %v269
        %v278 = vadd.f32 %v209, %v270
        %v279 = vadd.f32 %v210, %v271
        %v280 = vadd.f32 %v211, %v272
        %v281 = vadd.f32 %v212, %v273
        %v282 = vadd.f32 %v213, %v274
        %v283 = vsel %vm229, %v263, %v242
        %v284 = vsel %vm230, %v259, %v246
        %v285 = vsel %vm229, %v264, %v243
        %v286 = vsel %vm230, %v260, %v247
        %v287 = vsel %vm229, %v265, %v244
        %v288 = vsel %vm230, %v261, %v248
        %v289 = vsel %vm229, %v266, %v245
        %v290 = vsel %vm230, %v262, %v249
        %v291 = vadd.f32 %v275, %v283
        %v292 = vadd.f32 %v276, %v284
        %v293 = vadd.f32 %v277, %v285
        %v294 = vadd.f32 %v278, %v286
        %v295 = vadd.f32 %v279, %v287
        %v296 = vadd.f32 %v280, %v288
        %v297 = vadd.f32 %v281, %v289
        %v298 = vadd.f32 %v282, %v290
        %vm299 = vcmask 1047680
        %300 = vrot.lane.b32.xlu0 %v291, 16
        %v301 = vpop.permute.xlu0 %300
        %v302 = vsel %vm299, %v301, %v291
        %303 = vrot.lane.b32.xlu0 %v292, 16
        %v304 = vpop.permute.xlu0 %303
        %v305 = vsel %vm299, %v304, %v292
        %306 = vrot.lane.b32.xlu0 %v293, 16
        %v307 = vpop.permute.xlu0 %306
        %v308 = vsel %vm299, %v307, %v293
        %309 = vrot.lane.b32.xlu0 %v294, 16
        %v310 = vpop.permute.xlu0 %309
        %v311 = vsel %vm299, %v310, %v294
        %312 = vrot.lane.b32.xlu0 %v295, 16
        %v313 = vpop.permute.xlu0 %312
        %v314 = vsel %vm299, %v313, %v295
        %315 = vrot.lane.b32.xlu0 %v296, 16
        %v316 = vpop.permute.xlu0 %315
        %v317 = vsel %vm299, %v316, %v296
        %318 = vrot.lane.b32.xlu0 %v297, 16
        %v319 = vpop.permute.xlu0 %318
        %v320 = vsel %vm299, %v319, %v297
        %321 = vrot.lane.b32.xlu0 %v298, 16
        %v322 = vpop.permute.xlu0 %321
        %v323 = vsel %vm299, %v322, %v298
        %324 = vrot.lane.b32.xlu0 %v302, 16
        %v325 = vpop.permute.xlu0 %324
        %326 = vrot.lane.b32.xlu0 %v305, 16
        %v327 = vpop.permute.xlu0 %326
        %328 = vrot.lane.b32.xlu0 %v308, 16
        %v329 = vpop.permute.xlu0 %328
        %330 = vrot.lane.b32.xlu0 %v311, 16
        %v331 = vpop.permute.xlu0 %330
        %332 = vrot.lane.b32.xlu0 %v314, 16
        %v333 = vpop.permute.xlu0 %332
        %334 = vrot.lane.b32.xlu0 %v317, 16
        %v335 = vpop.permute.xlu0 %334
        %336 = vrot.lane.b32.xlu0 %v320, 16
        %v337 = vpop.permute.xlu0 %336
        %338 = vrot.lane.b32.xlu0 %v323, 16
        %v339 = vpop.permute.xlu0 %338
        %v340 = vsel %vm299, %v325, %v291
        %v341 = vsel %vm299, %v327, %v292
        %v342 = vsel %vm299, %v329, %v293
        %v343 = vsel %vm299, %v331, %v294
        %v344 = vsel %vm299, %v333, %v295
        %v345 = vsel %vm299, %v335, %v296
        %v346 = vsel %vm299, %v337, %v297
        %v347 = vsel %vm299, %v339, %v298
        %356 = vrot.lane.b32.xlu0 %v340, 127
        %v357 = vpop.permute.xlu0 %356
        %358 = vrot.lane.b32.xlu0 %v341, 127
        %v359 = vpop.permute.xlu0 %358
        %360 = vrot.lane.b32.xlu0 %v342, 127
        %v361 = vpop.permute.xlu0 %360
        %362 = vrot.lane.b32.xlu0 %v343, 127
        %v363 = vpop.permute.xlu0 %362
        %364 = vrot.lane.b32.xlu0 %v344, 127
        %v365 = vpop.permute.xlu0 %364
        %366 = vrot.lane.b32.xlu0 %v345, 127
        %v367 = vpop.permute.xlu0 %366
        %368 = vrot.lane.b32.xlu0 %v346, 127
        %v369 = vpop.permute.xlu0 %368
        %370 = vrot.lane.b32.xlu0 %v347, 127
        %v371 = vpop.permute.xlu0 %370
        %380 = vrot.lane.b32.xlu0 %v340, 113
        %v381 = vpop.permute.xlu0 %380
        %382 = vrot.lane.b32.xlu0 %v341, 113
        %v383 = vpop.permute.xlu0 %382
        %384 = vrot.lane.b32.xlu0 %v342, 113
        %v385 = vpop.permute.xlu0 %384
        %386 = vrot.lane.b32.xlu0 %v343, 113
        %v387 = vpop.permute.xlu0 %386
        %388 = vrot.lane.b32.xlu0 %v344, 113
        %v389 = vpop.permute.xlu0 %388
        %390 = vrot.lane.b32.xlu0 %v345, 113
        %v391 = vpop.permute.xlu0 %390
        %392 = vrot.lane.b32.xlu0 %v346, 113
        %v393 = vpop.permute.xlu0 %392
        %394 = vrot.lane.b32.xlu0 %v347, 113
        %v395 = vpop.permute.xlu0 %394
        %v404 = vsel %vm231, %v357, %v381
        %v405 = vsel %vm231, %v359, %v383
        %v406 = vsel %vm231, %v361, %v385
        %v407 = vsel %vm231, %v363, %v387
        %v408 = vsel %vm231, %v365, %v389
        %v409 = vsel %vm231, %v367, %v391
        %v410 = vsel %vm231, %v369, %v393
        %v411 = vsel %vm231, %v371, %v395
        %v412 = vadd.f32 %v291, %v404
        %v413 = vadd.f32 %v292, %v405
        %v414 = vadd.f32 %v293, %v406
        %v415 = vadd.f32 %v294, %v407
        %v416 = vadd.f32 %v295, %v408
        %v417 = vadd.f32 %v296, %v409
        %v418 = vadd.f32 %v297, %v410
        %v419 = vadd.f32 %v298, %v411
        %v420 = vsel %vm232, %v381, %v357
        %v421 = vsel %vm232, %v383, %v359
        %v422 = vsel %vm232, %v385, %v361
        %v423 = vsel %vm232, %v387, %v363
        %v424 = vsel %vm232, %v389, %v365
        %v425 = vsel %vm232, %v391, %v367
        %v426 = vsel %vm232, %v393, %v369
        %v427 = vsel %vm232, %v395, %v371
        %v428 = vadd.f32 %v412, %v420
        %v429 = vadd.f32 %v413, %v421
        %v430 = vadd.f32 %v414, %v422
        %v431 = vadd.f32 %v415, %v423
        %v432 = vadd.f32 %v416, %v424
        %v433 = vadd.f32 %v417, %v425
        %v434 = vadd.f32 %v418, %v426
        %v435 = vadd.f32 %v419, %v427
        %v436 = vrot.slane %v214, 1
        %v437 = vrot.slane %v216, 1
        %v438 = vrot.slane %v218, 1
        %v439 = vrot.slane %v220, 1
        %v440 = vrot.slane %v215, 1
        %v441 = vrot.slane %v217, 1
        %v442 = vrot.slane %v219, 1
        %v443 = vrot.slane %v221, 1
        %v444 = vsel %vm241, %v436, %v440
        %v445 = vsel %vm241, %v437, %v441
        %v446 = vsel %vm241, %v438, %v442
        %v447 = vsel %vm241, %v439, %v443
        %v448 = vsel %vm241, %v440, %v436
        %v449 = vsel %vm241, %v441, %v437
        %v450 = vsel %vm241, %v442, %v438
        %v451 = vsel %vm241, %v443, %v439
        %v452 = vrot.slane %v214, 7
        %v453 = vrot.slane %v216, 7
        %v454 = vrot.slane %v218, 7
        %v455 = vrot.slane %v220, 7
        %v456 = vrot.slane %v215, 7
        %v457 = vrot.slane %v217, 7
        %v458 = vrot.slane %v219, 7
        %v459 = vrot.slane %v221, 7
        %v460 = vsel %vm258, %v452, %v456
        %v461 = vsel %vm258, %v453, %v457
        %v462 = vsel %vm258, %v454, %v458
        %v463 = vsel %vm258, %v455, %v459
        %v464 = vsel %vm258, %v456, %v452
        %v465 = vsel %vm258, %v457, %v453
        %v466 = vsel %vm258, %v458, %v454
        %v467 = vsel %vm258, %v459, %v455
        %v468 = vsel %vm227, %v444, %v464
        %v469 = vsel %vm228, %v448, %v460
        %v470 = vsel %vm227, %v445, %v465
        %v471 = vsel %vm228, %v449, %v461
        %v472 = vsel %vm227, %v446, %v466
        %v473 = vsel %vm228, %v450, %v462
        %v474 = vsel %vm227, %v447, %v467
        %v475 = vsel %vm228, %v451, %v463
        %v476 = vadd.f32 %v214, %v468
        %v477 = vadd.f32 %v215, %v469
        %v478 = vadd.f32 %v216, %v470
        %v479 = vadd.f32 %v217, %v471
        %v480 = vadd.f32 %v218, %v472
        %v481 = vadd.f32 %v219, %v473
        %v482 = vadd.f32 %v220, %v474
        %v483 = vadd.f32 %v221, %v475
        %v484 = vsel %vm229, %v464, %v444
        %v485 = vsel %vm230, %v460, %v448
        %v486 = vsel %vm229, %v465, %v445
        %v487 = vsel %vm230, %v461, %v449
        %v488 = vsel %vm229, %v466, %v446
        %v489 = vsel %vm230, %v462, %v450
        %v490 = vsel %vm229, %v467, %v447
        %v491 = vsel %vm230, %v463, %v451
        %v492 = vadd.f32 %v476, %v484
        %v493 = vadd.f32 %v477, %v485
        %v494 = vadd.f32 %v478, %v486
        %v495 = vadd.f32 %v479, %v487
        %v496 = vadd.f32 %v480, %v488
        %v497 = vadd.f32 %v481, %v489
        %v498 = vadd.f32 %v482, %v490
        %v499 = vadd.f32 %v483, %v491
        %500 = vrot.lane.b32.xlu0 %v492, 16
        %v501 = vpop.permute.xlu0 %500
        %v502 = vsel %vm299, %v501, %v492
        %503 = vrot.lane.b32.xlu0 %v493, 16
        %v504 = vpop.permute.xlu0 %503
        %v505 = vsel %vm299, %v504, %v493
        %506 = vrot.lane.b32.xlu0 %v494, 16
        %v507 = vpop.permute.xlu0 %506
        %v508 = vsel %vm299, %v507, %v494
        %509 = vrot.lane.b32.xlu0 %v495, 16
        %v510 = vpop.permute.xlu0 %509
        %v511 = vsel %vm299, %v510, %v495
        %512 = vrot.lane.b32.xlu0 %v496, 16
        %v513 = vpop.permute.xlu0 %512
        %v514 = vsel %vm299, %v513, %v496
        %515 = vrot.lane.b32.xlu0 %v497, 16
        %v516 = vpop.permute.xlu0 %515
        %v517 = vsel %vm299, %v516, %v497
        %518 = vrot.lane.b32.xlu0 %v498, 16
        %v519 = vpop.permute.xlu0 %518
        %v520 = vsel %vm299, %v519, %v498
        %521 = vrot.lane.b32.xlu0 %v499, 16
        %v522 = vpop.permute.xlu0 %521
        %v523 = vsel %vm299, %v522, %v499
        %524 = vrot.lane.b32.xlu0 %v502, 16
        %v525 = vpop.permute.xlu0 %524
        %526 = vrot.lane.b32.xlu0 %v505, 16
        %v527 = vpop.permute.xlu0 %526
        %528 = vrot.lane.b32.xlu0 %v508, 16
        %v529 = vpop.permute.xlu0 %528
        %530 = vrot.lane.b32.xlu0 %v511, 16
        %v531 = vpop.permute.xlu0 %530
        %532 = vrot.lane.b32.xlu0 %v514, 16
        %v533 = vpop.permute.xlu0 %532
        %534 = vrot.lane.b32.xlu0 %v517, 16
        %v535 = vpop.permute.xlu0 %534
        %536 = vrot.lane.b32.xlu0 %v520, 16
        %v537 = vpop.permute.xlu0 %536
        %538 = vrot.lane.b32.xlu0 %v523, 16
        %v539 = vpop.permute.xlu0 %538
        %v540 = vsel %vm299, %v525, %v492
        %v541 = vsel %vm299, %v527, %v493
        %v542 = vsel %vm299, %v529, %v494
        %v543 = vsel %vm299, %v531, %v495
        %v544 = vsel %vm299, %v533, %v496
        %v545 = vsel %vm299, %v535, %v497
        %v546 = vsel %vm299, %v537, %v498
        %v547 = vsel %vm299, %v539, %v499
        %556 = vrot.lane.b32.xlu0 %v540, 127
        %v557 = vpop.permute.xlu0 %556
        %558 = vrot.lane.b32.xlu0 %v541, 127
        %v559 = vpop.permute.xlu0 %558
        %560 = vrot.lane.b32.xlu0 %v542, 127
        %v561 = vpop.permute.xlu0 %560
        %562 = vrot.lane.b32.xlu0 %v543, 127
        %v563 = vpop.permute.xlu0 %562
        %564 = vrot.lane.b32.xlu0 %v544, 127
        %v565 = vpop.permute.xlu0 %564
        %566 = vrot.lane.b32.xlu0 %v545, 127
        %v567 = vpop.permute.xlu0 %566
        %568 = vrot.lane.b32.xlu0 %v546, 127
        %v569 = vpop.permute.xlu0 %568
        %570 = vrot.lane.b32.xlu0 %v547, 127
        %v571 = vpop.permute.xlu0 %570
        %580 = vrot.lane.b32.xlu0 %v540, 113
        %v581 = vpop.permute.xlu0 %580
        %582 = vrot.lane.b32.xlu0 %v541, 113
        %v583 = vpop.permute.xlu0 %582
        %584 = vrot.lane.b32.xlu0 %v542, 113
        %v585 = vpop.permute.xlu0 %584
        %586 = vrot.lane.b32.xlu0 %v543, 113
        %v587 = vpop.permute.xlu0 %586
        %588 = vrot.lane.b32.xlu0 %v544, 113
        %v589 = vpop.permute.xlu0 %588
        %590 = vrot.lane.b32.xlu0 %v545, 113
        %v591 = vpop.permute.xlu0 %590
        %592 = vrot.lane.b32.xlu0 %v546, 113
        %v593 = vpop.permute.xlu0 %592
        %594 = vrot.lane.b32.xlu0 %v547, 113
        %v595 = vpop.permute.xlu0 %594
        %v604 = vsel %vm231, %v557, %v581
        %v605 = vsel %vm231, %v559, %v583
        %v606 = vsel %vm231, %v561, %v585
        %v607 = vsel %vm231, %v563, %v587
        %v608 = vsel %vm231, %v565, %v589
        %v609 = vsel %vm231, %v567, %v591
        %v610 = vsel %vm231, %v569, %v593
        %v611 = vsel %vm231, %v571, %v595
        %v612 = vadd.f32 %v492, %v604
        %v613 = vadd.f32 %v493, %v605
        %v614 = vadd.f32 %v494, %v606
        %v615 = vadd.f32 %v495, %v607
        %v616 = vadd.f32 %v496, %v608
        %v617 = vadd.f32 %v497, %v609
        %v618 = vadd.f32 %v498, %v610
        %v619 = vadd.f32 %v499, %v611
        %v620 = vsel %vm232, %v581, %v557
        %v621 = vsel %vm232, %v583, %v559
        %v622 = vsel %vm232, %v585, %v561
        %v623 = vsel %vm232, %v587, %v563
        %v624 = vsel %vm232, %v589, %v565
        %v625 = vsel %vm232, %v591, %v567
        %v626 = vsel %vm232, %v593, %v569
        %v627 = vsel %vm232, %v595, %v571
        %v628 = vadd.f32 %v612, %v620
        %v629 = vadd.f32 %v613, %v621
        %v630 = vadd.f32 %v614, %v622
        %v631 = vadd.f32 %v615, %v623
        %v632 = vadd.f32 %v616, %v624
        %v633 = vadd.f32 %v617, %v625
        %v634 = vadd.f32 %v618, %v626
        %v635 = vadd.f32 %v619, %v627
        %v636 = vmul.f32 %v206, %v206
        %v637 = vmul.f32 %v207, %v207
        %v638 = vmul.f32 %v208, %v208
        %v639 = vmul.f32 %v209, %v209
        %v640 = vmul.f32 %v210, %v210
        %v641 = vmul.f32 %v211, %v211
        %v642 = vmul.f32 %v212, %v212
        %v643 = vmul.f32 %v213, %v213
        %v644 = vrot.slane %v636, 1
        %v645 = vrot.slane %v638, 1
        %v646 = vrot.slane %v640, 1
        %v647 = vrot.slane %v642, 1
        %v648 = vrot.slane %v637, 1
        %v649 = vrot.slane %v639, 1
        %v650 = vrot.slane %v641, 1
        %v651 = vrot.slane %v643, 1
        %v652 = vsel %vm241, %v644, %v648
        %v653 = vsel %vm241, %v645, %v649
        %v654 = vsel %vm241, %v646, %v650
        %v655 = vsel %vm241, %v647, %v651
        %v656 = vsel %vm241, %v648, %v644
        %v657 = vsel %vm241, %v649, %v645
        %v658 = vsel %vm241, %v650, %v646
        %v659 = vsel %vm241, %v651, %v647
        %v660 = vrot.slane %v636, 7
        %v661 = vrot.slane %v638, 7
        %v662 = vrot.slane %v640, 7
        %v663 = vrot.slane %v642, 7
        %v664 = vrot.slane %v637, 7
        %v665 = vrot.slane %v639, 7
        %v666 = vrot.slane %v641, 7
        %v667 = vrot.slane %v643, 7
        %v668 = vsel %vm258, %v660, %v664
        %v669 = vsel %vm258, %v661, %v665
        %v670 = vsel %vm258, %v662, %v666
        %v671 = vsel %vm258, %v663, %v667
        %v672 = vsel %vm258, %v664, %v660
        %v673 = vsel %vm258, %v665, %v661
        %v674 = vsel %vm258, %v666, %v662
        %v675 = vsel %vm258, %v667, %v663
        %v676 = vsel %vm227, %v652, %v672
        %v677 = vsel %vm228, %v656, %v668
        %v678 = vsel %vm227, %v653, %v673
        %v679 = vsel %vm228, %v657, %v669
        %v680 = vsel %vm227, %v654, %v674
        %v681 = vsel %vm228, %v658, %v670
        %v682 = vsel %vm227, %v655, %v675
        %v683 = vsel %vm228, %v659, %v671
        %v684 = vadd.f32 %v636, %v676
        %v685 = vadd.f32 %v637, %v677
        %v686 = vadd.f32 %v638, %v678
        %v687 = vadd.f32 %v639, %v679
        %v688 = vadd.f32 %v640, %v680
        %v689 = vadd.f32 %v641, %v681
        %v690 = vadd.f32 %v642, %v682
        %v691 = vadd.f32 %v643, %v683
        %v692 = vsel %vm229, %v672, %v652
        %v693 = vsel %vm230, %v668, %v656
        %v694 = vsel %vm229, %v673, %v653
        %v695 = vsel %vm230, %v669, %v657
        %v696 = vsel %vm229, %v674, %v654
        %v697 = vsel %vm230, %v670, %v658
        %v698 = vsel %vm229, %v675, %v655
        %v699 = vsel %vm230, %v671, %v659
        %v700 = vadd.f32 %v684, %v692
        %v701 = vadd.f32 %v685, %v693
        %v702 = vadd.f32 %v686, %v694
        %v703 = vadd.f32 %v687, %v695
        %v704 = vadd.f32 %v688, %v696
        %v705 = vadd.f32 %v689, %v697
        %v706 = vadd.f32 %v690, %v698
        %v707 = vadd.f32 %v691, %v699
        %708 = vrot.lane.b32.xlu0 %v700, 16
        %v709 = vpop.permute.xlu0 %708
        %v710 = vsel %vm299, %v709, %v700
        %711 = vrot.lane.b32.xlu0 %v701, 16
        %v712 = vpop.permute.xlu0 %711
        %v713 = vsel %vm299, %v712, %v701
        %714 = vrot.lane.b32.xlu0 %v702, 16
        %v715 = vpop.permute.xlu0 %714
        %v716 = vsel %vm299, %v715, %v702
        %717 = vrot.lane.b32.xlu0 %v703, 16
        %v718 = vpop.permute.xlu0 %717
        %v719 = vsel %vm299, %v718, %v703
        %720 = vrot.lane.b32.xlu0 %v704, 16
        %v721 = vpop.permute.xlu0 %720
        %v722 = vsel %vm299, %v721, %v704
        %723 = vrot.lane.b32.xlu0 %v705, 16
        %v724 = vpop.permute.xlu0 %723
        %v725 = vsel %vm299, %v724, %v705
        %726 = vrot.lane.b32.xlu0 %v706, 16
        %v727 = vpop.permute.xlu0 %726
        %v728 = vsel %vm299, %v727, %v706
        %729 = vrot.lane.b32.xlu0 %v707, 16
        %v730 = vpop.permute.xlu0 %729
        %v731 = vsel %vm299, %v730, %v707
        %732 = vrot.lane.b32.xlu0 %v710, 16
        %v733 = vpop.permute.xlu0 %732
        %734 = vrot.lane.b32.xlu0 %v713, 16
        %v735 = vpop.permute.xlu0 %734
        %736 = vrot.lane.b32.xlu0 %v716, 16
        %v737 = vpop.permute.xlu0 %736
        %738 = vrot.lane.b32.xlu0 %v719, 16
        %v739 = vpop.permute.xlu0 %738
        %740 = vrot.lane.b32.xlu0 %v722, 16
        %v741 = vpop.permute.xlu0 %740
        %742 = vrot.lane.b32.xlu0 %v725, 16
        %v743 = vpop.permute.xlu0 %742
        %744 = vrot.lane.b32.xlu0 %v728, 16
        %v745 = vpop.permute.xlu0 %744
        %746 = vrot.lane.b32.xlu0 %v731, 16
        %v747 = vpop.permute.xlu0 %746
        %v748 = vsel %vm299, %v733, %v700
        %v749 = vsel %vm299, %v735, %v701
        %v750 = vsel %vm299, %v737, %v702
        %v751 = vsel %vm299, %v739, %v703
        %v752 = vsel %vm299, %v741, %v704
        %v753 = vsel %vm299, %v743, %v705
        %v754 = vsel %vm299, %v745, %v706
        %v755 = vsel %vm299, %v747, %v707
        %764 = vrot.lane.b32.xlu0 %v748, 127
        %v765 = vpop.permute.xlu0 %764
        %766 = vrot.lane.b32.xlu0 %v749, 127
        %v767 = vpop.permute.xlu0 %766
        %768 = vrot.lane.b32.xlu0 %v750, 127
        %v769 = vpop.permute.xlu0 %768
        %770 = vrot.lane.b32.xlu0 %v751, 127
        %v771 = vpop.permute.xlu0 %770
        %772 = vrot.lane.b32.xlu0 %v752, 127
        %v773 = vpop.permute.xlu0 %772
        %774 = vrot.lane.b32.xlu0 %v753, 127
        %v775 = vpop.permute.xlu0 %774
        %776 = vrot.lane.b32.xlu0 %v754, 127
        %v777 = vpop.permute.xlu0 %776
        %778 = vrot.lane.b32.xlu0 %v755, 127
        %v779 = vpop.permute.xlu0 %778
        %788 = vrot.lane.b32.xlu0 %v748, 113
        %v789 = vpop.permute.xlu0 %788
        %790 = vrot.lane.b32.xlu0 %v749, 113
        %v791 = vpop.permute.xlu0 %790
        %792 = vrot.lane.b32.xlu0 %v750, 113
        %v793 = vpop.permute.xlu0 %792
        %794 = vrot.lane.b32.xlu0 %v751, 113
        %v795 = vpop.permute.xlu0 %794
        %796 = vrot.lane.b32.xlu0 %v752, 113
        %v797 = vpop.permute.xlu0 %796
        %798 = vrot.lane.b32.xlu0 %v753, 113
        %v799 = vpop.permute.xlu0 %798
        %800 = vrot.lane.b32.xlu0 %v754, 113
        %v801 = vpop.permute.xlu0 %800
        %802 = vrot.lane.b32.xlu0 %v755, 113
        %v803 = vpop.permute.xlu0 %802
        %v812 = vsel %vm231, %v765, %v789
        %v813 = vsel %vm231, %v767, %v791
        %v814 = vsel %vm231, %v769, %v793
        %v815 = vsel %vm231, %v771, %v795
        %v816 = vsel %vm231, %v773, %v797
        %v817 = vsel %vm231, %v775, %v799
        %v818 = vsel %vm231, %v777, %v801
        %v819 = vsel %vm231, %v779, %v803
        %v820 = vadd.f32 %v700, %v812
        %v821 = vadd.f32 %v701, %v813
        %v822 = vadd.f32 %v702, %v814
        %v823 = vadd.f32 %v703, %v815
        %v824 = vadd.f32 %v704, %v816
        %v825 = vadd.f32 %v705, %v817
        %v826 = vadd.f32 %v706, %v818
        %v827 = vadd.f32 %v707, %v819
        %v828 = vsel %vm232, %v789, %v765
        %v829 = vsel %vm232, %v791, %v767
        %v830 = vsel %vm232, %v793, %v769
        %v831 = vsel %vm232, %v795, %v771
        %v832 = vsel %vm232, %v797, %v773
        %v833 = vsel %vm232, %v799, %v775
        %v834 = vsel %vm232, %v801, %v777
        %v835 = vsel %vm232, %v803, %v779
        %v836 = vadd.f32 %v820, %v828
        %v837 = vadd.f32 %v821, %v829
        %v838 = vadd.f32 %v822, %v830
        %v839 = vadd.f32 %v823, %v831
        %v840 = vadd.f32 %v824, %v832
        %v841 = vadd.f32 %v825, %v833
        %v842 = vadd.f32 %v826, %v834
        %v843 = vadd.f32 %v827, %v835
        %v844 = vmul.f32 %v214, %v214
        %v845 = vmul.f32 %v215, %v215
        %v846 = vmul.f32 %v216, %v216
        %v847 = vmul.f32 %v217, %v217
        %v848 = vmul.f32 %v218, %v218
        %v849 = vmul.f32 %v219, %v219
        %v850 = vmul.f32 %v220, %v220
        %v851 = vmul.f32 %v221, %v221
        %v852 = vrot.slane %v844, 1
        %v853 = vrot.slane %v846, 1
        %v854 = vrot.slane %v848, 1
        %v855 = vrot.slane %v850, 1
        %v856 = vrot.slane %v845, 1
        %v857 = vrot.slane %v847, 1
        %v858 = vrot.slane %v849, 1
        %v859 = vrot.slane %v851, 1
        %v860 = vsel %vm241, %v852, %v856
        %v861 = vsel %vm241, %v853, %v857
        %v862 = vsel %vm241, %v854, %v858
        %v863 = vsel %vm241, %v855, %v859
        %v864 = vsel %vm241, %v856, %v852
        %v865 = vsel %vm241, %v857, %v853
        %v866 = vsel %vm241, %v858, %v854
        %v867 = vsel %vm241, %v859, %v855
        %v868 = vrot.slane %v844, 7
        %v869 = vrot.slane %v846, 7
        %v870 = vrot.slane %v848, 7
        %v871 = vrot.slane %v850, 7
        %v872 = vrot.slane %v845, 7
        %v873 = vrot.slane %v847, 7
        %v874 = vrot.slane %v849, 7
        %v875 = vrot.slane %v851, 7
        %v876 = vsel %vm258, %v868, %v872
        %v877 = vsel %vm258, %v869, %v873
        %v878 = vsel %vm258, %v870, %v874
        %v879 = vsel %vm258, %v871, %v875
        %v880 = vsel %vm258, %v872, %v868
        %v881 = vsel %vm258, %v873, %v869
        %v882 = vsel %vm258, %v874, %v870
        %v883 = vsel %vm258, %v875, %v871
        %v884 = vsel %vm227, %v860, %v880
        %v885 = vsel %vm228, %v864, %v876
        %v886 = vsel %vm227, %v861, %v881
        %v887 = vsel %vm228, %v865, %v877
        %v888 = vsel %vm227, %v862, %v882
        %v889 = vsel %vm228, %v866, %v878
        %v890 = vsel %vm227, %v863, %v883
        %v891 = vsel %vm228, %v867, %v879
        %v892 = vadd.f32 %v844, %v884
        %v893 = vadd.f32 %v845, %v885
        %v894 = vadd.f32 %v846, %v886
        %v895 = vadd.f32 %v847, %v887
        %v896 = vadd.f32 %v848, %v888
        %v897 = vadd.f32 %v849, %v889
        %v898 = vadd.f32 %v850, %v890
        %v899 = vadd.f32 %v851, %v891
        %v900 = vsel %vm229, %v880, %v860
        %v901 = vsel %vm230, %v876, %v864
        %v902 = vsel %vm229, %v881, %v861
        %v903 = vsel %vm230, %v877, %v865
        %v904 = vsel %vm229, %v882, %v862
        %v905 = vsel %vm230, %v878, %v866
        %v906 = vsel %vm229, %v883, %v863
        %v907 = vsel %vm230, %v879, %v867
        %v908 = vadd.f32 %v892, %v900
        %v909 = vadd.f32 %v893, %v901
        %v910 = vadd.f32 %v894, %v902
        %v911 = vadd.f32 %v895, %v903
        %v912 = vadd.f32 %v896, %v904
        %v913 = vadd.f32 %v897, %v905
        %v914 = vadd.f32 %v898, %v906
        %v915 = vadd.f32 %v899, %v907
        %916 = vrot.lane.b32.xlu0 %v908, 16
        %v917 = vpop.permute.xlu0 %916
        %v918 = vsel %vm299, %v917, %v908
        %919 = vrot.lane.b32.xlu0 %v909, 16
        %v920 = vpop.permute.xlu0 %919
        %v921 = vsel %vm299, %v920, %v909
        %922 = vrot.lane.b32.xlu0 %v910, 16
        %v923 = vpop.permute.xlu0 %922
        %v924 = vsel %vm299, %v923, %v910
        %925 = vrot.lane.b32.xlu0 %v911, 16
        %v926 = vpop.permute.xlu0 %925
        %v927 = vsel %vm299, %v926, %v911
        %928 = vrot.lane.b32.xlu0 %v912, 16
        %v929 = vpop.permute.xlu0 %928
        %v930 = vsel %vm299, %v929, %v912
        %931 = vrot.lane.b32.xlu0 %v913, 16
        %v932 = vpop.permute.xlu0 %931
        %v933 = vsel %vm299, %v932, %v913
        %934 = vrot.lane.b32.xlu0 %v914, 16
        %v935 = vpop.permute.xlu0 %934
        %v936 = vsel %vm299, %v935, %v914
        %937 = vrot.lane.b32.xlu0 %v915, 16
        %v938 = vpop.permute.xlu0 %937
        %v939 = vsel %vm299, %v938, %v915
        %940 = vrot.lane.b32.xlu0 %v918, 16
        %v941 = vpop.permute.xlu0 %940
        %942 = vrot.lane.b32.xlu0 %v921, 16
        %v943 = vpop.permute.xlu0 %942
        %944 = vrot.lane.b32.xlu0 %v924, 16
        %v945 = vpop.permute.xlu0 %944
        %946 = vrot.lane.b32.xlu0 %v927, 16
        %v947 = vpop.permute.xlu0 %946
        %948 = vrot.lane.b32.xlu0 %v930, 16
        %v949 = vpop.permute.xlu0 %948
        %950 = vrot.lane.b32.xlu0 %v933, 16
        %v951 = vpop.permute.xlu0 %950
        %952 = vrot.lane.b32.xlu0 %v936, 16
        %v953 = vpop.permute.xlu0 %952
        %954 = vrot.lane.b32.xlu0 %v939, 16
        %v955 = vpop.permute.xlu0 %954
        %v956 = vsel %vm299, %v941, %v908
        %v957 = vsel %vm299, %v943, %v909
        %v958 = vsel %vm299, %v945, %v910
        %v959 = vsel %vm299, %v947, %v911
        %v960 = vsel %vm299, %v949, %v912
        %v961 = vsel %vm299, %v951, %v913
        %v962 = vsel %vm299, %v953, %v914
        %v963 = vsel %vm299, %v955, %v915
        %972 = vrot.lane.b32.xlu0 %v956, 127
        %v973 = vpop.permute.xlu0 %972
        %974 = vrot.lane.b32.xlu0 %v957, 127
        %v975 = vpop.permute.xlu0 %974
        %976 = vrot.lane.b32.xlu0 %v958, 127
        %v977 = vpop.permute.xlu0 %976
        %978 = vrot.lane.b32.xlu0 %v959, 127
        %v979 = vpop.permute.xlu0 %978
        %980 = vrot.lane.b32.xlu0 %v960, 127
        %v981 = vpop.permute.xlu0 %980
        %982 = vrot.lane.b32.xlu0 %v961, 127
        %v983 = vpop.permute.xlu0 %982
        %984 = vrot.lane.b32.xlu0 %v962, 127
        %v985 = vpop.permute.xlu0 %984
        %986 = vrot.lane.b32.xlu0 %v963, 127
        %v987 = vpop.permute.xlu0 %986
        %996 = vrot.lane.b32.xlu0 %v956, 113
        %v997 = vpop.permute.xlu0 %996
        %998 = vrot.lane.b32.xlu0 %v957, 113
        %v999 = vpop.permute.xlu0 %998
        %1000 = vrot.lane.b32.xlu0 %v958, 113
        %v1001 = vpop.permute.xlu0 %1000
        %1002 = vrot.lane.b32.xlu0 %v959, 113
        %v1003 = vpop.permute.xlu0 %1002
        %1004 = vrot.lane.b32.xlu0 %v960, 113
        %v1005 = vpop.permute.xlu0 %1004
        %1006 = vrot.lane.b32.xlu0 %v961, 113
        %v1007 = vpop.permute.xlu0 %1006
        %1008 = vrot.lane.b32.xlu0 %v962, 113
        %v1009 = vpop.permute.xlu0 %1008
        %1010 = vrot.lane.b32.xlu0 %v963, 113
        %v1011 = vpop.permute.xlu0 %1010
        %v1020 = vsel %vm231, %v973, %v997
        %v1021 = vsel %vm231, %v975, %v999
        %v1022 = vsel %vm231, %v977, %v1001
        %v1023 = vsel %vm231, %v979, %v1003
        %v1024 = vsel %vm231, %v981, %v1005
        %v1025 = vsel %vm231, %v983, %v1007
        %v1026 = vsel %vm231, %v985, %v1009
        %v1027 = vsel %vm231, %v987, %v1011
        %v1028 = vadd.f32 %v908, %v1020
        %v1029 = vadd.f32 %v909, %v1021
        %v1030 = vadd.f32 %v910, %v1022
        %v1031 = vadd.f32 %v911, %v1023
        %v1032 = vadd.f32 %v912, %v1024
        %v1033 = vadd.f32 %v913, %v1025
        %v1034 = vadd.f32 %v914, %v1026
        %v1035 = vadd.f32 %v915, %v1027
        %v1036 = vsel %vm232, %v997, %v973
        %v1037 = vsel %vm232, %v999, %v975
        %v1038 = vsel %vm232, %v1001, %v977
        %v1039 = vsel %vm232, %v1003, %v979
        %v1040 = vsel %vm232, %v1005, %v981
        %v1041 = vsel %vm232, %v1007, %v983
        %v1042 = vsel %vm232, %v1009, %v985
        %v1043 = vsel %vm232, %v1011, %v987
        %v1044 = vadd.f32 %v1028, %v1036
        %v1045 = vadd.f32 %v1029, %v1037
        %v1046 = vadd.f32 %v1030, %v1038
        %v1047 = vadd.f32 %v1031, %v1039
        %v1048 = vadd.f32 %v1032, %v1040
        %v1049 = vadd.f32 %v1033, %v1041
        %v1050 = vadd.f32 %v1034, %v1042
        %v1051 = vadd.f32 %v1035, %v1043
        %v1052 = vmul.f32 %v206, %v214
        %v1053 = vmul.f32 %v207, %v215
        %v1054 = vmul.f32 %v208, %v216
        %v1055 = vmul.f32 %v209, %v217
        %v1056 = vmul.f32 %v210, %v218
        %v1057 = vmul.f32 %v211, %v219
        %v1058 = vmul.f32 %v212, %v220
        %v1059 = vmul.f32 %v213, %v221
        %v1060 = vrot.slane %v1052, 1
        %v1061 = vrot.slane %v1054, 1
        %v1062 = vrot.slane %v1056, 1
        %v1063 = vrot.slane %v1058, 1
        %v1064 = vrot.slane %v1053, 1
        %v1065 = vrot.slane %v1055, 1
        %v1066 = vrot.slane %v1057, 1
        %v1067 = vrot.slane %v1059, 1
        %v1068 = vsel %vm241, %v1060, %v1064
        %v1069 = vsel %vm241, %v1061, %v1065
        %v1070 = vsel %vm241, %v1062, %v1066
        %v1071 = vsel %vm241, %v1063, %v1067
        %v1072 = vsel %vm241, %v1064, %v1060
        %v1073 = vsel %vm241, %v1065, %v1061
        %v1074 = vsel %vm241, %v1066, %v1062
        %v1075 = vsel %vm241, %v1067, %v1063
        %v1076 = vrot.slane %v1052, 7
        %v1077 = vrot.slane %v1054, 7
        %v1078 = vrot.slane %v1056, 7
        %v1079 = vrot.slane %v1058, 7
        %v1080 = vrot.slane %v1053, 7
        %v1081 = vrot.slane %v1055, 7
        %v1082 = vrot.slane %v1057, 7
        %v1083 = vrot.slane %v1059, 7
        %v1084 = vsel %vm258, %v1076, %v1080
        %v1085 = vsel %vm258, %v1077, %v1081
        %v1086 = vsel %vm258, %v1078, %v1082
        %v1087 = vsel %vm258, %v1079, %v1083
        %v1088 = vsel %vm258, %v1080, %v1076
        %v1089 = vsel %vm258, %v1081, %v1077
        %v1090 = vsel %vm258, %v1082, %v1078
        %v1091 = vsel %vm258, %v1083, %v1079
        %v1092 = vsel %vm227, %v1068, %v1088
        %v1093 = vsel %vm228, %v1072, %v1084
        %v1094 = vsel %vm227, %v1069, %v1089
        %v1095 = vsel %vm228, %v1073, %v1085
        %v1096 = vsel %vm227, %v1070, %v1090
        %v1097 = vsel %vm228, %v1074, %v1086
        %v1098 = vsel %vm227, %v1071, %v1091
        %v1099 = vsel %vm228, %v1075, %v1087
        %v1100 = vadd.f32 %v1052, %v1092
        %v1101 = vadd.f32 %v1053, %v1093
        %v1102 = vadd.f32 %v1054, %v1094
        %v1103 = vadd.f32 %v1055, %v1095
        %v1104 = vadd.f32 %v1056, %v1096
        %v1105 = vadd.f32 %v1057, %v1097
        %v1106 = vadd.f32 %v1058, %v1098
        %v1107 = vadd.f32 %v1059, %v1099
        %v1108 = vsel %vm229, %v1088, %v1068
        %v1109 = vsel %vm230, %v1084, %v1072
        %v1110 = vsel %vm229, %v1089, %v1069
        %v1111 = vsel %vm230, %v1085, %v1073
        %v1112 = vsel %vm229, %v1090, %v1070
        %v1113 = vsel %vm230, %v1086, %v1074
        %v1114 = vsel %vm229, %v1091, %v1071
        %v1115 = vsel %vm230, %v1087, %v1075
        %v1116 = vadd.f32 %v1100, %v1108
        %v1117 = vadd.f32 %v1101, %v1109
        %v1118 = vadd.f32 %v1102, %v1110
        %v1119 = vadd.f32 %v1103, %v1111
        %v1120 = vadd.f32 %v1104, %v1112
        %v1121 = vadd.f32 %v1105, %v1113
        %v1122 = vadd.f32 %v1106, %v1114
        %v1123 = vadd.f32 %v1107, %v1115
        %1124 = vrot.lane.b32.xlu0 %v1116, 16
        %v1125 = vpop.permute.xlu0 %1124
        %v1126 = vsel %vm299, %v1125, %v1116
        %1127 = vrot.lane.b32.xlu0 %v1117, 16
        %v1128 = vpop.permute.xlu0 %1127
        %v1129 = vsel %vm299, %v1128, %v1117
        %1130 = vrot.lane.b32.xlu0 %v1118, 16
        %v1131 = vpop.permute.xlu0 %1130
        %v1132 = vsel %vm299, %v1131, %v1118
        %1133 = vrot.lane.b32.xlu0 %v1119, 16
        %v1134 = vpop.permute.xlu0 %1133
        %v1135 = vsel %vm299, %v1134, %v1119
        %1136 = vrot.lane.b32.xlu0 %v1120, 16
        %v1137 = vpop.permute.xlu0 %1136
        %v1138 = vsel %vm299, %v1137, %v1120
        %1139 = vrot.lane.b32.xlu0 %v1121, 16
        %v1140 = vpop.permute.xlu0 %1139
        %v1141 = vsel %vm299, %v1140, %v1121
        %1142 = vrot.lane.b32.xlu0 %v1122, 16
        %v1143 = vpop.permute.xlu0 %1142
        %v1144 = vsel %vm299, %v1143, %v1122
        %1145 = vrot.lane.b32.xlu0 %v1123, 16
        %v1146 = vpop.permute.xlu0 %1145
        %v1147 = vsel %vm299, %v1146, %v1123
        %1148 = vrot.lane.b32.xlu0 %v1126, 16
        %v1149 = vpop.permute.xlu0 %1148
        %1150 = vrot.lane.b32.xlu0 %v1129, 16
        %v1151 = vpop.permute.xlu0 %1150
        %1152 = vrot.lane.b32.xlu0 %v1132, 16
        %v1153 = vpop.permute.xlu0 %1152
        %1154 = vrot.lane.b32.xlu0 %v1135, 16
        %v1155 = vpop.permute.xlu0 %1154
        %1156 = vrot.lane.b32.xlu0 %v1138, 16
        %v1157 = vpop.permute.xlu0 %1156
        %1158 = vrot.lane.b32.xlu0 %v1141, 16
        %v1159 = vpop.permute.xlu0 %1158
        %1160 = vrot.lane.b32.xlu0 %v1144, 16
        %v1161 = vpop.permute.xlu0 %1160
        %1162 = vrot.lane.b32.xlu0 %v1147, 16
        %v1163 = vpop.permute.xlu0 %1162
        %v1164 = vsel %vm299, %v1149, %v1116
        %v1165 = vsel %vm299, %v1151, %v1117
        %v1166 = vsel %vm299, %v1153, %v1118
        %v1167 = vsel %vm299, %v1155, %v1119
        %v1168 = vsel %vm299, %v1157, %v1120
        %v1169 = vsel %vm299, %v1159, %v1121
        %v1170 = vsel %vm299, %v1161, %v1122
        %v1171 = vsel %vm299, %v1163, %v1123
        %1180 = vrot.lane.b32.xlu0 %v1164, 127
        %v1181 = vpop.permute.xlu0 %1180
        %1182 = vrot.lane.b32.xlu0 %v1165, 127
        %v1183 = vpop.permute.xlu0 %1182
        %1184 = vrot.lane.b32.xlu0 %v1166, 127
        %v1185 = vpop.permute.xlu0 %1184
        %1186 = vrot.lane.b32.xlu0 %v1167, 127
        %v1187 = vpop.permute.xlu0 %1186
        %1188 = vrot.lane.b32.xlu0 %v1168, 127
        %v1189 = vpop.permute.xlu0 %1188
        %1190 = vrot.lane.b32.xlu0 %v1169, 127
        %v1191 = vpop.permute.xlu0 %1190
        %1192 = vrot.lane.b32.xlu0 %v1170, 127
        %v1193 = vpop.permute.xlu0 %1192
        %1194 = vrot.lane.b32.xlu0 %v1171, 127
        %v1195 = vpop.permute.xlu0 %1194
        %1204 = vrot.lane.b32.xlu0 %v1164, 113
        %v1205 = vpop.permute.xlu0 %1204
        %1206 = vrot.lane.b32.xlu0 %v1165, 113
        %v1207 = vpop.permute.xlu0 %1206
        %1208 = vrot.lane.b32.xlu0 %v1166, 113
        %v1209 = vpop.permute.xlu0 %1208
        %1210 = vrot.lane.b32.xlu0 %v1167, 113
        %v1211 = vpop.permute.xlu0 %1210
        %1212 = vrot.lane.b32.xlu0 %v1168, 113
        %v1213 = vpop.permute.xlu0 %1212
        %1214 = vrot.lane.b32.xlu0 %v1169, 113
        %v1215 = vpop.permute.xlu0 %1214
        %1216 = vrot.lane.b32.xlu0 %v1170, 113
        %v1217 = vpop.permute.xlu0 %1216
        %1218 = vrot.lane.b32.xlu0 %v1171, 113
        %v1219 = vpop.permute.xlu0 %1218
        %v1228 = vsel %vm231, %v1181, %v1205
        %v1229 = vsel %vm231, %v1183, %v1207
        %v1230 = vsel %vm231, %v1185, %v1209
        %v1231 = vsel %vm231, %v1187, %v1211
        %v1232 = vsel %vm231, %v1189, %v1213
        %v1233 = vsel %vm231, %v1191, %v1215
        %v1234 = vsel %vm231, %v1193, %v1217
        %v1235 = vsel %vm231, %v1195, %v1219
        %v1236 = vadd.f32 %v1116, %v1228
        %v1237 = vadd.f32 %v1117, %v1229
        %v1238 = vadd.f32 %v1118, %v1230
        %v1239 = vadd.f32 %v1119, %v1231
        %v1240 = vadd.f32 %v1120, %v1232
        %v1241 = vadd.f32 %v1121, %v1233
        %v1242 = vadd.f32 %v1122, %v1234
        %v1243 = vadd.f32 %v1123, %v1235
        %v1244 = vsel %vm232, %v1205, %v1181
        %v1245 = vsel %vm232, %v1207, %v1183
        %v1246 = vsel %vm232, %v1209, %v1185
        %v1247 = vsel %vm232, %v1211, %v1187
        %v1248 = vsel %vm232, %v1213, %v1189
        %v1249 = vsel %vm232, %v1215, %v1191
        %v1250 = vsel %vm232, %v1217, %v1193
        %v1251 = vsel %vm232, %v1219, %v1195
        %v1252 = vadd.f32 %v1236, %v1244
        %v1253 = vadd.f32 %v1237, %v1245
        %v1254 = vadd.f32 %v1238, %v1246
        %v1255 = vadd.f32 %v1239, %v1247
        %v1256 = vadd.f32 %v1240, %v1248
        %v1257 = vadd.f32 %v1241, %v1249
        %v1258 = vadd.f32 %v1242, %v1250
        %v1259 = vadd.f32 %v1243, %v1251
        %v1260 = vmul.f32 %v428, %v428
        %v1261 = vmul.f32 %v429, %v429
        %v1262 = vmul.f32 %v430, %v430
        %v1263 = vmul.f32 %v431, %v431
        %v1264 = vmul.f32 %v432, %v432
        %v1265 = vmul.f32 %v433, %v433
        %v1266 = vmul.f32 %v434, %v434
        %v1267 = vmul.f32 %v435, %v435
        %v1268 = vmul.f32 %v628, %v628
        %v1269 = vmul.f32 %v629, %v629
        %v1270 = vmul.f32 %v630, %v630
        %v1271 = vmul.f32 %v631, %v631
        %v1272 = vmul.f32 %v632, %v632
        %v1273 = vmul.f32 %v633, %v633
        %v1274 = vmul.f32 %v634, %v634
        %v1275 = vmul.f32 %v635, %v635
        %v1276 = vmul.f32 %v428, %v628
        %v1277 = vmul.f32 %v429, %v629
        %v1278 = vmul.f32 %v430, %v630
        %v1279 = vmul.f32 %v431, %v631
        %v1280 = vmul.f32 %v432, %v632
        %v1281 = vmul.f32 %v433, %v633
        %v1282 = vmul.f32 %v434, %v634
        %v1283 = vmul.f32 %v435, %v635
        %v1284 = vmul.f32 %v1276, 2.0
        %v1285 = vmul.f32 %v1277, 2.0
        %v1286 = vmul.f32 %v1278, 2.0
        %v1287 = vmul.f32 %v1279, 2.0
        %v1288 = vmul.f32 %v1280, 2.0
        %v1289 = vmul.f32 %v1281, 2.0
        %v1290 = vmul.f32 %v1282, 2.0
        %v1291 = vmul.f32 %v1283, 2.0
        %v1292 = vadd.f32 %v1284, 0.0081
        %v1293 = vadd.f32 %v1285, 0.0081
        %v1294 = vadd.f32 %v1286, 0.0081
        %v1295 = vadd.f32 %v1287, 0.0081
        %v1296 = vadd.f32 %v1288, 0.0081
        %v1297 = vadd.f32 %v1289, 0.0081
        %v1298 = vadd.f32 %v1290, 0.0081
        %v1299 = vadd.f32 %v1291, 0.0081
        %v1300 = vmul.f32 %v1252, 9.0
        %v1301 = vmul.f32 %v1253, 9.0
        %v1302 = vmul.f32 %v1254, 9.0
        %v1303 = vmul.f32 %v1255, 9.0
        %v1304 = vmul.f32 %v1256, 9.0
        %v1305 = vmul.f32 %v1257, 9.0
        %v1306 = vmul.f32 %v1258, 9.0
        %v1307 = vmul.f32 %v1259, 9.0
        %v1308 = vsub.f32 %v1300, %v1276
        %v1309 = vsub.f32 %v1301, %v1277
        %v1310 = vsub.f32 %v1302, %v1278
        %v1311 = vsub.f32 %v1303, %v1279
        %v1312 = vsub.f32 %v1304, %v1280
        %v1313 = vsub.f32 %v1305, %v1281
        %v1314 = vsub.f32 %v1306, %v1282
        %v1315 = vsub.f32 %v1307, %v1283
        %v1316 = vmul.f32 %v1308, 2.0
        %v1317 = vmul.f32 %v1309, 2.0
        %v1318 = vmul.f32 %v1310, 2.0
        %v1319 = vmul.f32 %v1311, 2.0
        %v1320 = vmul.f32 %v1312, 2.0
        %v1321 = vmul.f32 %v1313, 2.0
        %v1322 = vmul.f32 %v1314, 2.0
        %v1323 = vmul.f32 %v1315, 2.0
        %v1324 = vadd.f32 %v1316, 0.0729
        %v1325 = vadd.f32 %v1317, 0.0729
        %v1326 = vadd.f32 %v1318, 0.0729
        %v1327 = vadd.f32 %v1319, 0.0729
        %v1328 = vadd.f32 %v1320, 0.0729
        %v1329 = vadd.f32 %v1321, 0.0729
        %v1330 = vadd.f32 %v1322, 0.0729
        %v1331 = vadd.f32 %v1323, 0.0729
        %v1332 = vmul.f32 %v1292, %v1324
        %v1333 = vmul.f32 %v1293, %v1325
        %v1334 = vmul.f32 %v1294, %v1326
        %v1335 = vmul.f32 %v1295, %v1327
        %v1336 = vmul.f32 %v1296, %v1328
        %v1337 = vmul.f32 %v1297, %v1329
        %v1338 = vmul.f32 %v1298, %v1330
        %v1339 = vmul.f32 %v1299, %v1331
        %v1340 = vadd.f32 %v1260, %v1268
        %v1341 = vadd.f32 %v1261, %v1269
        %v1342 = vadd.f32 %v1262, %v1270
        %v1343 = vadd.f32 %v1263, %v1271
        %v1344 = vadd.f32 %v1264, %v1272
        %v1345 = vadd.f32 %v1265, %v1273
        %v1346 = vadd.f32 %v1266, %v1274
        %v1347 = vadd.f32 %v1267, %v1275
        %v1348 = vadd.f32 %v1340, 0.0081
        %v1349 = vadd.f32 %v1341, 0.0081
        %v1350 = vadd.f32 %v1342, 0.0081
        %v1351 = vadd.f32 %v1343, 0.0081
        %v1352 = vadd.f32 %v1344, 0.0081
        %v1353 = vadd.f32 %v1345, 0.0081
        %v1354 = vadd.f32 %v1346, 0.0081
        %v1355 = vadd.f32 %v1347, 0.0081
        %v1356 = vmul.f32 %v836, 9.0
        %v1357 = vmul.f32 %v837, 9.0
        %v1358 = vmul.f32 %v838, 9.0
        %v1359 = vmul.f32 %v839, 9.0
        %v1360 = vmul.f32 %v840, 9.0
        %v1361 = vmul.f32 %v841, 9.0
        %v1362 = vmul.f32 %v842, 9.0
        %v1363 = vmul.f32 %v843, 9.0
        %v1364 = vsub.f32 %v1356, %v1260
        %v1365 = vsub.f32 %v1357, %v1261
        %v1366 = vsub.f32 %v1358, %v1262
        %v1367 = vsub.f32 %v1359, %v1263
        %v1368 = vsub.f32 %v1360, %v1264
        %v1369 = vsub.f32 %v1361, %v1265
        %v1370 = vsub.f32 %v1362, %v1266
        %v1371 = vsub.f32 %v1363, %v1267
        %v1372 = vmul.f32 %v1044, 9.0
        %v1373 = vmul.f32 %v1045, 9.0
        %v1374 = vmul.f32 %v1046, 9.0
        %v1375 = vmul.f32 %v1047, 9.0
        %v1376 = vmul.f32 %v1048, 9.0
        %v1377 = vmul.f32 %v1049, 9.0
        %v1378 = vmul.f32 %v1050, 9.0
        %v1379 = vmul.f32 %v1051, 9.0
        %v1380 = vadd.f32 %v1364, %v1372
        %v1381 = vadd.f32 %v1365, %v1373
        %v1382 = vadd.f32 %v1366, %v1374
        %v1383 = vadd.f32 %v1367, %v1375
        %v1384 = vadd.f32 %v1368, %v1376
        %v1385 = vadd.f32 %v1369, %v1377
        %v1386 = vadd.f32 %v1370, %v1378
        %v1387 = vadd.f32 %v1371, %v1379
        %v1388 = vsub.f32 %v1380, %v1268
        %v1389 = vsub.f32 %v1381, %v1269
        %v1390 = vsub.f32 %v1382, %v1270
        %v1391 = vsub.f32 %v1383, %v1271
        %v1392 = vsub.f32 %v1384, %v1272
        %v1393 = vsub.f32 %v1385, %v1273
        %v1394 = vsub.f32 %v1386, %v1274
        %v1395 = vsub.f32 %v1387, %v1275
        %v1396 = vadd.f32 %v1388, 0.0729
        %v1397 = vadd.f32 %v1389, 0.0729
        %v1398 = vadd.f32 %v1390, 0.0729
        %v1399 = vadd.f32 %v1391, 0.0729
        %v1400 = vadd.f32 %v1392, 0.0729
        %v1401 = vadd.f32 %v1393, 0.0729
        %v1402 = vadd.f32 %v1394, 0.0729
        %v1403 = vadd.f32 %v1395, 0.0729
        %v1404 = vmul.f32 %v1348, %v1396
        %v1405 = vmul.f32 %v1349, %v1397
        %v1406 = vmul.f32 %v1350, %v1398
        %v1407 = vmul.f32 %v1351, %v1399
        %v1408 = vmul.f32 %v1352, %v1400
        %v1409 = vmul.f32 %v1353, %v1401
        %v1410 = vmul.f32 %v1354, %v1402
        %v1411 = vmul.f32 %v1355, %v1403
        %v1412 = vrcp.pop %v1404
        %v1413 = vrcp.pop %v1405
        %v1414 = vrcp.pop %v1406
        %v1415 = vrcp.pop %v1407
        %v1416 = vrcp.pop %v1408
        %v1417 = vrcp.pop %v1409
        %v1418 = vrcp.pop %v1410
        %v1419 = vrcp.pop %v1411
        %v1420 = vmul.f32 %v1404, %v1412
        %v1421 = vmul.f32 %v1405, %v1413
        %v1422 = vmul.f32 %v1406, %v1414
        %v1423 = vmul.f32 %v1407, %v1415
        %v1424 = vmul.f32 %v1408, %v1416
        %v1425 = vmul.f32 %v1409, %v1417
        %v1426 = vmul.f32 %v1410, %v1418
        %v1427 = vmul.f32 %v1411, %v1419
        %v1428 = vsub.f32 2.0, %v1420
        %v1429 = vsub.f32 2.0, %v1421
        %v1430 = vsub.f32 2.0, %v1422
        %v1431 = vsub.f32 2.0, %v1423
        %v1432 = vsub.f32 2.0, %v1424
        %v1433 = vsub.f32 2.0, %v1425
        %v1434 = vsub.f32 2.0, %v1426
        %v1435 = vsub.f32 2.0, %v1427
        %v1436 = vmul.f32 %v1412, %v1428
        %v1437 = vmul.f32 %v1413, %v1429
        %v1438 = vmul.f32 %v1414, %v1430
        %v1439 = vmul.f32 %v1415, %v1431
        %v1440 = vmul.f32 %v1416, %v1432
        %v1441 = vmul.f32 %v1417, %v1433
        %v1442 = vmul.f32 %v1418, %v1434
        %v1443 = vmul.f32 %v1419, %v1435
        %v1444 = vmul.f32 %v1404, %v1436
        %v1445 = vmul.f32 %v1405, %v1437
        %v1446 = vmul.f32 %v1406, %v1438
        %v1447 = vmul.f32 %v1407, %v1439
        %v1448 = vmul.f32 %v1408, %v1440
        %v1449 = vmul.f32 %v1409, %v1441
        %v1450 = vmul.f32 %v1410, %v1442
        %v1451 = vmul.f32 %v1411, %v1443
        %v1452 = vsub.f32 2.0, %v1444
        %v1453 = vsub.f32 2.0, %v1445
        %v1454 = vsub.f32 2.0, %v1446
        %v1455 = vsub.f32 2.0, %v1447
        %v1456 = vsub.f32 2.0, %v1448
        %v1457 = vsub.f32 2.0, %v1449
        %v1458 = vsub.f32 2.0, %v1450
        %v1459 = vsub.f32 2.0, %v1451
        %v1460 = vmul.f32 %v1436, %v1452
        %v1461 = vmul.f32 %v1437, %v1453
        %v1462 = vmul.f32 %v1438, %v1454
        %v1463 = vmul.f32 %v1439, %v1455
        %v1464 = vmul.f32 %v1440, %v1456
        %v1465 = vmul.f32 %v1441, %v1457
        %v1466 = vmul.f32 %v1442, %v1458
        %v1467 = vmul.f32 %v1443, %v1459
        %v1468 = vmul.f32 %v1332, %v1460
        %v1469 = vmul.f32 %v1333, %v1461
        %v1470 = vmul.f32 %v1334, %v1462
        %v1471 = vmul.f32 %v1335, %v1463
        %v1472 = vmul.f32 %v1336, %v1464
        %v1473 = vmul.f32 %v1337, %v1465
        %v1474 = vmul.f32 %v1338, %v1466
        %v1475 = vmul.f32 %v1339, %v1467
        %v1476 = vsub.f32 1.0, %v1468
        %v1477 = vsub.f32 1.0, %v1469
        %v1478 = vsub.f32 1.0, %v1470
        %v1479 = vsub.f32 1.0, %v1471
        %v1480 = vsub.f32 1.0, %v1472
        %v1481 = vsub.f32 1.0, %v1473
        %v1482 = vsub.f32 1.0, %v1474
        %v1483 = vsub.f32 1.0, %v1475
        %v1484 = vmul.f32 %v1476, 0.5
        %v1485 = vmul.f32 %v1477, 0.5
        %v1486 = vmul.f32 %v1478, 0.5
        %v1487 = vmul.f32 %v1479, 0.5
        %v1488 = vmul.f32 %v1480, 0.5
        %v1489 = vmul.f32 %v1481, 0.5
        %v1490 = vmul.f32 %v1482, 0.5
        %v1491 = vmul.f32 %v1483, 0.5
        %v1492 = vmax.f32 %v1484, 0.0
        %v1493 = vmax.f32 %v1485, 0.0
        %v1494 = vmax.f32 %v1486, 0.0
        %v1495 = vmax.f32 %v1487, 0.0
        %v1496 = vmax.f32 %v1488, 0.0
        %v1497 = vmax.f32 %v1489, 0.0
        %v1498 = vmax.f32 %v1490, 0.0
        %v1499 = vmax.f32 %v1491, 0.0
        %v1500 = vmin.f32 %v1492, 1.0
        %v1501 = vmin.f32 %v1493, 1.0
        %v1502 = vmin.f32 %v1494, 1.0
        %v1503 = vmin.f32 %v1495, 1.0
        %v1504 = vmin.f32 %v1496, 1.0
        %v1505 = vmin.f32 %v1497, 1.0
        %v1506 = vmin.f32 %v1498, 1.0
        %v1507 = vmin.f32 %v1499, 1.0
        %v1508 = vsub.f32 %v214, %v206
        %v1509 = vsub.f32 %v215, %v207
        %v1510 = vsub.f32 %v216, %v208
        %v1511 = vsub.f32 %v217, %v209
        %v1512 = vsub.f32 %v218, %v210
        %v1513 = vsub.f32 %v219, %v211
        %v1514 = vsub.f32 %v220, %v212
        %v1515 = vsub.f32 %v221, %v213
        %v1516 = vand.u32 2147483647, %v1508
        %v1517 = vand.u32 2147483647, %v1509
        %v1518 = vand.u32 2147483647, %v1510
        %v1519 = vand.u32 2147483647, %v1511
        %v1520 = vand.u32 2147483647, %v1512
        %v1521 = vand.u32 2147483647, %v1513
        %v1522 = vand.u32 2147483647, %v1514
        %v1523 = vand.u32 2147483647, %v1515
        %v1524 = vmul.f32 %v1500, 0.2125
        %v1525 = vmul.f32 %v1501, 0.2125
        %v1526 = vmul.f32 %v1502, 0.2125
        %v1527 = vmul.f32 %v1503, 0.2125
        %v1528 = vmul.f32 %v1504, 0.2125
        %v1529 = vmul.f32 %v1505, 0.2125
        %v1530 = vmul.f32 %v1506, 0.2125
        %v1531 = vmul.f32 %v1507, 0.2125
        %v1532 = vmul.f32 %v1516, 0.0375
        %v1533 = vmul.f32 %v1517, 0.0375
        %v1534 = vmul.f32 %v1518, 0.0375
        %v1535 = vmul.f32 %v1519, 0.0375
        %v1536 = vmul.f32 %v1520, 0.0375
        %v1537 = vmul.f32 %v1521, 0.0375
        %v1538 = vmul.f32 %v1522, 0.0375
        %v1539 = vmul.f32 %v1523, 0.0375
        %v1540 = vadd.f32 %v1524, %v1532
        %v1541 = vadd.f32 %v1525, %v1533
        %v1542 = vadd.f32 %v1526, %v1534
        %v1543 = vadd.f32 %v1527, %v1535
        %v1544 = vadd.f32 %v1528, %v1536
        %v1545 = vadd.f32 %v1529, %v1537
        %v1546 = vadd.f32 %v1530, %v1538
        %v1547 = vadd.f32 %v1531, %v1539
        %vm1548 = vcmask 130048
        %v1549 = vsel %vm1548, %v1540, 0.0
        %v1550 = vsel %vm1548, %v1542, 0.0
        %v1551 = vadd.f32 %v1549, %v1550
        %v1552 = vsel %vm1548, %v1544, 0.0
        %v1553 = vadd.f32 %v1551, %v1552
        %v1554 = vsel %vm1548, %v1546, 0.0
        %v1555 = vadd.f32 %v1553, %v1554
        %v1556 = vsel %vm1548, %v1541, 0.0
        %v1557 = vsel %vm1548, %v1543, 0.0
        %v1558 = vadd.f32 %v1556, %v1557
        %v1559 = vsel %vm1548, %v1545, 0.0
        %v1560 = vadd.f32 %v1558, %v1559
        %v1561 = vsel %vm1548, %v1547, 0.0
        %v1562 = vadd.f32 %v1560, %v1561
        %1563 = vst.msk [vmem:[%s205] sm:$0xff] %vm1548, %v1555
        %1564 = vst.msk [vmem:[%s205 + $0x8] sm:$0xff] %vm1548, %v1562
        %s1565 = sand.u32 %s82, 1
        %s1566 = scalar_lea.sflag [#allocation4], %s1565
        %s1567 = sand.u32 %s82, 1
        %s1568 = smul.addr %s1567, 16
        %s1569 = scalar_lea.vmem [#allocation7], %s1568
        // Predicated region
        $region37: #{tpu_custom_call.1} parent=27 // pred_check
          %p1570 = pneg %p92
        $region38: #{tpu_custom_call.1} parent=27 // pred_check_branch
          %1572 = sbr.rel (%p1570) target = $region40
        $region39: #{tpu_custom_call.1} parent=27 // pred_region
          %1574 = vsyncadd %s1566, 0
          %s1575 = smul.addr %s22, 2
          %s1576 = smul.addr %s1575, 8
          %s1577 = scalar_lea.hbm %s2, %s1576
          %s1578 = sshll.u32 %s1569, 4
          %s1579 = int_to_ptr.vmem [resolvable:$true] %s1578
          %s1580 = sshll.u32 %s1577, 4
          %s1581 = int_to_ptr.hbm [resolvable:$true] %s1580
          %1586 = dma.vmem_to_hbm [thread:$0]  %s1579, 256, %s1581, %s1566, 128, 128, 8
        $region40: #{tpu_custom_call.1} parent=27 // pred_fallthru
          _
      $region28: #{tpu_custom_call.1} parent=5 // pred_fallthru
        _
      %p1587 = scmp.le.s32.totalorder 2, %s17
      // Predicated region
      $region41: #{tpu_custom_call.1} parent=5 // pred_check
        %p1588 = pneg %p1587
      $region42: #{tpu_custom_call.1} parent=5 // pred_check_branch
        %1590 = sbr.rel (%p1588) target = $region44
      $region43: #{tpu_custom_call.1} parent=5 // pred_region
        %s1591 = ssub.s32 %s17, 2
        // Predicated region
        $region45: #{tpu_custom_call.1} parent=43 // pred_check
          %p1592 = pneg %p98
        $region46: #{tpu_custom_call.1} parent=43 // pred_check_branch
          %1594 = sbr.rel (%p1592) target = $region48
        $region47: #{tpu_custom_call.1} parent=43 // pred_region
          %s1595 = sand.u32 %s83, 1
          %s1596 = scalar_lea.sflag [#allocation4], %s1595
          %s1597 = sand.u32 %s83, 1
          %s1598 = smul.addr %s1597, 16
          %s1599 = scalar_lea.vmem [#allocation7], %s1598
          %1601 = dma.done %s1596, 256
        $region48: #{tpu_custom_call.1} parent=43 // pred_fallthru
          _
      $region44: #{tpu_custom_call.1} parent=5 // pred_fallthru
        _
    $region6: #{tpu_custom_call.1} parent=1 // loop_footer
      %s21 = sadd.s32 1, %s17
    $region7: #{tpu_custom_call.1} parent=1 // loop_footer_branch
      %16 = sbr.rel target = $region3
    $region8: #{tpu_custom_call.1} parent=1 // loop_exit
      _
    %1602 = vsyncpa [#allocation3], 1
    %s1603 = scalar_lea.sflag [#allocation3], 1
    %1604 = vsyncpa %s1603, 1
    %1605 = vsyncpa [#allocation6], 1
    %s1606 = scalar_lea.sflag [#allocation6], 1
    %1607 = vsyncpa %s1606, 1
    %1608 = vsyncpa [#allocation4], 1
    %s1609 = scalar_lea.sflag [#allocation4], 1
    %1610 = vsyncpa %s1609, 1

</llo_original>
